<compile_context>
chip_gen: v6e
topology: v6e:2x2x1
jax: 0.10.0
libtpu: 0.0.40
codegen_flags: <defaults>
</compile_context>

<pallas_src>
import functools

import jax
import jax.numpy as jnp
from jax.experimental import pallas as pl
from jax.experimental.pallas import tpu as pltpu


def _pick_q_tile(s):
    """Largest query tile that divides S (no masking needed) and bounds the
    (tq, S) score tile.  Falls back to the full sequence for small/odd S."""
    if s <= 512:
        return s
    for tq in (512, 256, 128):
        if s % tq == 0:
            return tq
    return s


def _attention_kernel(x_ref, wqkv_ref, bqkv_ref, wo_ref, bo_ref, o_ref,
                      qkv_ref, *, n_heads, d_k, tq):
    """grid = (batch, query-tile).

    x_ref    : (1, S, C)        tokens for this batch, resident across q tiles
    wqkv_ref : (C, 3*h*d_k) bf16 fused QKV weight, q cols pre-scaled by d_k**-0.5
    bqkv_ref : (1, 3*h*d_k) f32  fused QKV bias (q part pre-scaled)
    wo_ref   : (h, d_k, C)  bf16 output-projection weight per head
    bo_ref   : (1, C)       f32  output-projection bias
    o_ref    : (1, tq, C)        output tokens for this query tile
    qkv_ref  : (S, 3*h*d_k) bf16 VMEM scratch: fused QKV of the full sequence,
                                 written once per batch element (q-tile 0)
    """
    qi = pl.program_id(1)
    s_len = x_ref.shape[1]
    hdk = n_heads * d_k

    # Fused QKV projection for the whole sequence, once per batch element.
    @pl.when(qi == 0)
    def _():
        xb = x_ref[0].astype(jnp.bfloat16)                          # (S, C)
        qkv = jnp.dot(xb, wqkv_ref[...],
                      preferred_element_type=jnp.float32)           # (S, 3hdk)
        qkv_ref[...] = (qkv + bqkv_ref[...]).astype(jnp.bfloat16)

    if tq == s_len:                       # single query tile (DDPM default)
        rows = slice(None)
    else:                                 # tq is a multiple of 128 here
        rows = pl.ds(pl.multiple_of(qi * tq, 128), tq)

    acc = None                            # (tq, C) f32, accumulated over heads
    for h in range(n_heads):              # static loop; n_heads is tiny
        q = qkv_ref[rows, pl.ds(h * d_k, d_k)]                      # (tq, dk)
        k = qkv_ref[:, pl.ds(hdk + h * d_k, d_k)]                   # (S,  dk)
        v = qkv_ref[:, pl.ds(2 * hdk + h * d_k, d_k)]               # (S,  dk)

        # Scores (scale already folded into q); stable, unnormalized softmax.
        s = jax.lax.dot_general(q, k, (((1,), (1,)), ((), ())),
                                preferred_element_type=jnp.float32)  # (tq, S)
        m = jnp.max(s, axis=-1, keepdims=True)
        p = jnp.exp(s - m)
        l = jnp.sum(p, axis=-1, keepdims=True)

        # p @ v on unnormalized p, then deferred normalization on (tq, d_k).
        res = jnp.dot(p.astype(jnp.bfloat16), v,
                      preferred_element_type=jnp.float32)            # (tq, dk)
        res = res * pl.reciprocal(l, approx=True)

        out_h = jnp.dot(res.astype(jnp.bfloat16), wo_ref[h],
                        preferred_element_type=jnp.float32)          # (tq, C)
        acc = out_h if acc is None else acc + out_h

    x_tile = x_ref[0] if tq == s_len else x_ref[0, rows, :]
    o_ref[0] = (acc + bo_ref[...]
                + x_tile.astype(jnp.float32)).astype(o_ref.dtype)


def attention_forward(x_nchw, proj_w, proj_b, out_w, out_b,
                      *, n_heads, d_k, t=None):
    """AttentionBlock.forward on NCHW input, via a fused Pallas kernel.

    proj_w: (n_heads*3*d_k, C)  PyTorch Linear weight of self.projection
    proj_b: (n_heads*3*d_k,)
    out_w : (C, n_heads*d_k)    PyTorch Linear weight of self.output
    out_b : (C,)
    """
    del t  # unused, matching the PyTorch forward signature
    B, C, H, W = x_nchw.shape
    S = H * W
    hdk = n_heads * d_k
    scale = float(d_k) ** -0.5
    tq = _pick_q_tile(S)
    n_qt = S // tq

    # ---- glue: NCHW -> (B, S, C) tokens (channels on the TPU lane axis) ----
    x_seq = jnp.transpose(x_nchw.reshape(B, C, S), (0, 2, 1))        # (B, S, C)

    # ---- weight preprocessing: PyTorch layouts -> fused / per-head slices --
    # projection rows are laid out per-head as [q|k|v]*d_k; regroup columns as
    # [all-heads q | all-heads k | all-heads v] and fold the softmax scale
    # into the q columns.
    w = proj_w.reshape(n_heads, 3, d_k, C)                # (h, part, i, C)
    w = jnp.transpose(w, (3, 1, 0, 2)).reshape(C, 3 * hdk)
    b = proj_b.reshape(n_heads, 3, d_k)
    b = jnp.transpose(b, (1, 0, 2)).reshape(1, 3 * hdk)
    w = w.at[:, :hdk].multiply(scale)
    b = b.at[:, :hdk].multiply(scale)
    w_qkv = w.astype(jnp.bfloat16)
    b_qkv = b.astype(jnp.float32)
    # output projection: res features are head-major -> (h, d_k, C)
    wo = out_w.T.reshape(n_heads, d_k, C).astype(jnp.bfloat16)
    bo = out_b.reshape(1, C).astype(jnp.float32)

    kernel = functools.partial(_attention_kernel,
                               n_heads=n_heads, d_k=d_k, tq=tq)

    # Explicit VMEM budget: double-buffered x/out, resident bf16 weights,
    # the bf16 QKV scratch and the (tq, S) f32 score/exp tiles.  Capped at
    # 64 MiB so the request is valid on v5e / v6e / v7x.
    itemsize = jnp.dtype(x_nchw.dtype).itemsize
    est = (2 * S * C * itemsize            # x (double-buffered, per batch)
           + 2 * tq * C * itemsize         # out (double-buffered)
           + S * 3 * hdk * 2               # fused QKV scratch (bf16)
           + 2 * 2 * (3 * hdk * C + hdk * C)   # bf16 weights (double-buffered)
           + 3 * tq * S * 4)               # (tq, S) f32 score/exp intermediates
    vmem_limit = int(min(max(2 * est, 32 * 1024 * 1024), 64 * 1024 * 1024))

    out_seq = pl.pallas_call(
        kernel,
        out_shape=jax.ShapeDtypeStruct((B, S, C), x_nchw.dtype),
        grid_spec=pltpu.PrefetchScalarGridSpec(
            num_scalar_prefetch=0,
            grid=(B, n_qt),
            in_specs=[
                pl.BlockSpec((1, S, C), lambda bb, qi: (bb, 0, 0)),        # x
                pl.BlockSpec((C, 3 * hdk), lambda bb, qi: (0, 0)),         # w_qkv
                pl.BlockSpec((1, 3 * hdk), lambda bb, qi: (0, 0)),         # b_qkv
                pl.BlockSpec((n_heads, d_k, C), lambda bb, qi: (0, 0, 0)),  # wo
                pl.BlockSpec((1, C), lambda bb, qi: (0, 0)),               # bo
            ],
            out_specs=pl.BlockSpec((1, tq, C), lambda bb, qi: (bb, qi, 0)),
            scratch_shapes=[pltpu.VMEM((S, 3 * hdk), jnp.bfloat16)],
        ),
        compiler_params=pltpu.CompilerParams(
            dimension_semantics=("parallel", "arbitrary"),
            vmem_limit_bytes=vmem_limit,
        ),
    )(x_seq, w_qkv, b_qkv, wo, bo)

    # ---- glue: (B, S, C) -> NCHW ----
    return jnp.transpose(out_seq, (0, 2, 1)).reshape(B, C, H, W)


if __name__ == "__main__":
    key = jax.random.PRNGKey(0)
    k_x, k_pw, k_pb, k_ow, k_ob = jax.random.split(key, 5)

    B, C, H, W = 2, 4, 16, 16
    n_heads = 1
    d_k = C                    # PyTorch default: d_k=None -> n_channels
    x = jax.random.normal(k_x, (B, C, H, W), dtype=jnp.float32)

    # Deterministic PyTorch-style Linear init: U(-1/sqrt(fan_in), 1/sqrt(fan_in))
    bound_p = 1.0 / (C ** 0.5)
    proj_w = jax.random.uniform(k_pw, (n_heads * d_k * 3, C),
                                minval=-bound_p, maxval=bound_p,
                                dtype=jnp.float32)
    proj_b = jax.random.uniform(k_pb, (n_heads * d_k * 3,),
                                minval=-bound_p, maxval=bound_p,
                                dtype=jnp.float32)
    bound_o = 1.0 / ((n_heads * d_k) ** 0.5)
    out_w = jax.random.uniform(k_ow, (C, n_heads * d_k),
                               minval=-bound_o, maxval=bound_o,
                               dtype=jnp.float32)
    out_b = jax.random.uniform(k_ob, (C,),
                               minval=-bound_o, maxval=bound_o,
                               dtype=jnp.float32)

    out = attention_forward(x, proj_w, proj_b, out_w, out_b,
                            n_heads=n_heads, d_k=d_k)
    out = jax.block_until_ready(out)
    assert out.shape == (B, C, H, W), out.shape

    # ---- pure-JAX f32 reference of the same forward pass ----
    scale = d_k ** -0.5
    hp = jax.lax.Precision.HIGHEST
    xs = jnp.transpose(x.reshape(B, C, H * W), (0, 2, 1))              # (B,S,C)
    qkv = jnp.einsum('bsc,fc->bsf', xs, proj_w, precision=hp) + proj_b
    qkv = qkv.reshape(B, H * W, n_heads, 3 * d_k)
    q, k, v = qkv[..., :d_k], qkv[..., d_k:2 * d_k], qkv[..., 2 * d_k:]
    attn = jnp.einsum('bihd,bjhd->bijh', q, k, precision=hp) * scale
    attn = jax.nn.softmax(attn, axis=2)
    res = jnp.einsum('bijh,bjhd->bihd', attn, v, precision=hp)
    res = res.reshape(B, H * W, n_heads * d_k)
    res = jnp.einsum('bsf,cf->bsc', res, out_w, precision=hp) + out_b
    res = res + xs
    ref = jnp.transpose(res, (0, 2, 1)).reshape(B, C, H, W)

    # Tolerance accounts for bf16 matmul operands (f32 accumulation) vs the
    # f32 HIGHEST-precision reference.
    max_err = float(jnp.max(jnp.abs(out - ref)))
    assert jnp.allclose(out, ref, atol=5e-2, rtol=5e-2), max_err

    print("KERNEL_OK")
</pallas_src>

<mosaic_0001>
module attributes {stable_mosaic.version = 11 : i64} {
  func.func @_attention_kernel(%arg0: i32, %arg1: i32, %arg2: memref<1x256x4xf32, #tpu.memory_space<vmem>>, %arg3: memref<4x12xbf16, #tpu.memory_space<vmem>>, %arg4: memref<1x12xf32, #tpu.memory_space<vmem>>, %arg5: memref<1x4x4xbf16, #tpu.memory_space<vmem>>, %arg6: memref<1x4xf32, #tpu.memory_space<vmem>>, %arg7: memref<1x256x4xf32, #tpu.memory_space<vmem>>, %arg8: memref<256x12xbf16, #tpu.memory_space<vmem>>) attributes {dimension_semantics = [#tpu.dimension_semantics<parallel>, #tpu.dimension_semantics<arbitrary>], iteration_bounds = array<i64: 2, 1>, scalar_prefetch = 0 : i64, scratch_operands = 1 : i64, tpu.core_type = #tpu.core_type<tc>, window_params = [{transform_indices = @transform_0, window_bounds = array<i64: 1, 256, 4>}, {pipeline_mode = #tpu.pipeline_mode<synchronous>, transform_indices = @transform_1, window_bounds = array<i64: 4, 12>}, {pipeline_mode = #tpu.pipeline_mode<synchronous>, transform_indices = @transform_2, window_bounds = array<i64: 1, 12>}, {pipeline_mode = #tpu.pipeline_mode<synchronous>, transform_indices = @transform_3, window_bounds = array<i64: 1, 4, 4>}, {pipeline_mode = #tpu.pipeline_mode<synchronous>, transform_indices = @transform_4, window_bounds = array<i64: 1, 4>}, {transform_indices = @transform_5, window_bounds = array<i64: 1, 256, 4>}]} {
    %c0_i32 = arith.constant 0 : i32
    %0 = arith.cmpi eq, %arg1, %c0_i32 : i32
    %1 = arith.extui %0 : i1 to i32
    %c0_i32_0 = arith.constant 0 : i32
    %2 = arith.cmpi ne, %1, %c0_i32_0 : i32
    scf.if %2 {
      %c0_19 = arith.constant 0 : index
      %c0_20 = arith.constant 0 : index
      %c0_21 = arith.constant 0 : index
      %32 = vector.load %arg2[%c0_19, %c0_20, %c0_21] : memref<1x256x4xf32, #tpu.memory_space<vmem>>, vector<1x256x4xf32>
      %33 = vector.shape_cast %32 : vector<1x256x4xf32> to vector<256x4xf32>
      %34 = arith.truncf %33 : vector<256x4xf32> to vector<256x4xbf16>
      %c0_22 = arith.constant 0 : index
      %c0_23 = arith.constant 0 : index
      %35 = vector.load %arg3[%c0_22, %c0_23] : memref<4x12xbf16, #tpu.memory_space<vmem>>, vector<4x12xbf16>
      %cst_24 = arith.constant dense<0.000000e+00> : vector<256x12xf32>
      %36 = tpu.matmul %34, %35, %cst_24 {dimension_numbers = #tpu.dot_dimension_numbers<[1], [0], [0], [1], [0, 0, 1, 1], [], []>} : vector<256x4xbf16>, vector<4x12xbf16>, vector<256x12xf32> -> vector<256x12xf32>
      %c0_25 = arith.constant 0 : index
      %c0_26 = arith.constant 0 : index
      %37 = vector.load %arg4[%c0_25, %c0_26] : memref<1x12xf32, #tpu.memory_space<vmem>>, vector<1x12xf32>
      %38 = vector.broadcast %37 : vector<1x12xf32> to vector<256x12xf32>
      %39 = arith.addf %36, %38 : vector<256x12xf32>
      %40 = arith.truncf %39 : vector<256x12xf32> to vector<256x12xbf16>
      %c0_27 = arith.constant 0 : index
      %c0_28 = arith.constant 0 : index
      %41 = vector.load %arg8[%c0_27, %c0_28] : memref<256x12xbf16, #tpu.memory_space<vmem>>, vector<256x12xbf16>
      tpu.vector_store %arg8[%c0_27, %c0_28], %40 {strides = array<i32>} : memref<256x12xbf16, #tpu.memory_space<vmem>>, vector<256x12xbf16>,
    } else {
    }
    %c0 = arith.constant 0 : index
    %c0_1 = arith.constant 0 : index
    %3 = vector.load %arg8[%c0, %c0_1] : memref<256x12xbf16, #tpu.memory_space<vmem>>, vector<256x4xbf16>
    %c0_2 = arith.constant 0 : index
    %c4 = arith.constant 4 : index
    %4 = vector.load %arg8[%c0_2, %c4] : memref<256x12xbf16, #tpu.memory_space<vmem>>, vector<256x4xbf16>
    %c0_3 = arith.constant 0 : index
    %c8 = arith.constant 8 : index
    %5 = vector.load %arg8[%c0_3, %c8] : memref<256x12xbf16, #tpu.memory_space<vmem>>, vector<256x4xbf16>
    %cst = arith.constant dense<0.000000e+00> : vector<256x256xf32>
    %6 = tpu.matmul %3, %4, %cst {dimension_numbers = #tpu.dot_dimension_numbers<[1], [1], [0], [0], [0, 0, 1, 0], [], []>} : vector<256x4xbf16>, vector<256x4xbf16>, vector<256x256xf32> -> vector<256x256xf32>
    %cst_4 = arith.constant dense<0xFF800000> : vector<256xf32>
    %7 = vector.multi_reduction <maximumf>, %6, %cst_4 [1] : vector<256x256xf32> to vector<256xf32>
    %8 = vector.shape_cast %7 : vector<256xf32> to vector<256x1xf32>
    %9 = vector.broadcast %8 : vector<256x1xf32> to vector<256x256xf32>
    %10 = arith.subf %6, %9 : vector<256x256xf32>
    %11 = math.exp %10 : vector<256x256xf32>
    %cst_5 = arith.constant dense<0.000000e+00> : vector<256xf32>
    %12 = vector.multi_reduction <add>, %11, %cst_5 [1] : vector<256x256xf32> to vector<256xf32>
    %13 = vector.shape_cast %12 : vector<256xf32> to vector<256x1xf32>
    %14 = arith.truncf %11 : vector<256x256xf32> to vector<256x256xbf16>
    %cst_6 = arith.constant dense<0.000000e+00> : vector<256x4xf32>
    %15 = tpu.matmul %14, %5, %cst_6 {dimension_numbers = #tpu.dot_dimension_numbers<[1], [0], [0], [1], [0, 0, 1, 1], [], []>} : vector<256x256xbf16>, vector<256x4xbf16>, vector<256x4xf32> -> vector<256x4xf32>
    %16 = tpu.reciprocal %13 {approx = true} : vector<256x1xf32> -> vector<256x1xf32>
    %17 = vector.broadcast %16 : vector<256x1xf32> to vector<256x4xf32>
    %18 = arith.mulf %15, %17 : vector<256x4xf32>
    %19 = arith.truncf %18 : vector<256x4xf32> to vector<256x4xbf16>
    %c0_7 = arith.constant 0 : index
    %c0_8 = arith.constant 0 : index
    %c0_9 = arith.constant 0 : index
    %20 = vector.load %arg5[%c0_7, %c0_8, %c0_9] : memref<1x4x4xbf16, #tpu.memory_space<vmem>>, vector<1x4x4xbf16>
    %21 = vector.shape_cast %20 : vector<1x4x4xbf16> to vector<4x4xbf16>
    %cst_10 = arith.constant dense<0.000000e+00> : vector<256x4xf32>
    %22 = tpu.matmul %19, %21, %cst_10 {dimension_numbers = #tpu.dot_dimension_numbers<[1], [0], [0], [1], [0, 0, 1, 1], [], []>} : vector<256x4xbf16>, vector<4x4xbf16>, vector<256x4xf32> -> vector<256x4xf32>
    %c0_11 = arith.constant 0 : index
    %c0_12 = arith.constant 0 : index
    %c0_13 = arith.constant 0 : index
    %23 = vector.load %arg2[%c0_11, %c0_12, %c0_13] : memref<1x256x4xf32, #tpu.memory_space<vmem>>, vector<1x256x4xf32>
    %24 = vector.shape_cast %23 : vector<1x256x4xf32> to vector<256x4xf32>
    %c0_14 = arith.constant 0 : index
    %c0_15 = arith.constant 0 : index
    %25 = vector.load %arg6[%c0_14, %c0_15] : memref<1x4xf32, #tpu.memory_space<vmem>>, vector<1x4xf32>
    %26 = vector.broadcast %25 : vector<1x4xf32> to vector<256x4xf32>
    %27 = arith.addf %22, %26 : vector<256x4xf32>
    %28 = arith.addf %27, %24 : vector<256x4xf32>
    %c0_16 = arith.constant 0 : index
    %c0_17 = arith.constant 0 : index
    %c0_18 = arith.constant 0 : index
    %29 = vector.load %arg7[%c0_16, %c0_17, %c0_18] : memref<1x256x4xf32, #tpu.memory_space<vmem>>, vector<1x256x4xf32>
    %30 = vector.shape_cast %29 : vector<1x256x4xf32> to vector<256x4xf32>
    %31 = vector.shape_cast %28 : vector<256x4xf32> to vector<1x256x4xf32>
    tpu.vector_store %arg7[%c0_16, %c0_17, %c0_18], %31 {strides = array<i32>} : memref<1x256x4xf32, #tpu.memory_space<vmem>>, vector<1x256x4xf32>,
    return
  }
  func.func @transform_0(%arg0: i32, %arg1: i32) -> (i32, i32, i32) {
    %c0_i32 = arith.constant 0 : i32
    %c0_i32_0 = arith.constant 0 : i32
    %c0_i32_1 = arith.constant 0 : i32
    return %arg0, %c0_i32, %c0_i32_0 : i32, i32, i32
  }
  func.func @transform_1(%arg0: i32, %arg1: i32) -> (i32, i32) {
    %c0_i32 = arith.constant 0 : i32
    %c0_i32_0 = arith.constant 0 : i32
    %c0_i32_1 = arith.constant 0 : i32
    return %c0_i32, %c0_i32_0 : i32, i32
  }
  func.func @transform_2(%arg0: i32, %arg1: i32) -> (i32, i32) {
    %c0_i32 = arith.constant 0 : i32
    %c0_i32_0 = arith.constant 0 : i32
    %c0_i32_1 = arith.constant 0 : i32
    return %c0_i32, %c0_i32_0 : i32, i32
  }
  func.func @transform_3(%arg0: i32, %arg1: i32) -> (i32, i32, i32) {
    %c0_i32 = arith.constant 0 : i32
    %c0_i32_0 = arith.constant 0 : i32
    %c0_i32_1 = arith.constant 0 : i32
    %c0_i32_2 = arith.constant 0 : i32
    return %c0_i32, %c0_i32_0, %c0_i32_1 : i32, i32, i32
  }
  func.func @transform_4(%arg0: i32, %arg1: i32) -> (i32, i32) {
    %c0_i32 = arith.constant 0 : i32
    %c0_i32_0 = arith.constant 0 : i32
    %c0_i32_1 = arith.constant 0 : i32
    return %c0_i32, %c0_i32_0 : i32, i32
  }
  func.func @transform_5(%arg0: i32, %arg1: i32) -> (i32, i32, i32) {
    %c0_i32 = arith.constant 0 : i32
    %c0_i32_0 = arith.constant 0 : i32
    return %arg0, %arg1, %c0_i32 : i32, i32, i32
  }
}

</mosaic_0001>

<llo_original>
// kernel: tpu_custom_call.1
$region0: #{tpu_custom_call.1}
  #allocation0 [shape = 'u32[]', space=smem, size = 0x4, offset = 0x4, fixed_abs, tag = 'smem constant byte address 0x4 - core index']
  #allocation1 [shape = 'u32[144,128]{1,0:T(1,128)}', space=vmem, size = 0x12000, scoped, tag = 'internal scratch']
  #allocation2 [shape = 'bf16[256,12]{1,0:T(8,128)(2,1)}', space=vmem, size = 0x10000, scoped, tag = 'scratch operand']
  %s0 = inlined_call_operand.vmem [shape: f32[2,256,4], index: 0, kind: input, shape index: {}]
  %s1 = inlined_call_operand.vmem [shape: bf16[4,12], index: 1, kind: input, shape index: {}]
  %s2 = inlined_call_operand.vmem [shape: f32[1,12], index: 2, kind: input, shape index: {}]
  %s3 = inlined_call_operand.vmem [shape: bf16[1,4,4], index: 3, kind: input, shape index: {}]
  %s4 = inlined_call_operand.vmem [shape: f32[1,4], index: 4, kind: input, shape index: {}]
  %s5 = inlined_call_operand.vmem [shape: f32[2,256,4], index: 5, kind: output, shape index: {}]
  %s6 = sld [smem:[#allocation0]]
  $region57: #{tpu_custom_call.1} parent=0
    _
  %s8 = ssub.s32 1, %s6
  %s9 = scalar_select 0, %s8, %s6
  loop: start=0, step=1, limit=4
  $region2: #{tpu_custom_call.1} parent=0 // loop_pre_header
    _
  $region3: #{tpu_custom_call.1} parent=0 // loop_header
    %s11 = sphi 0, %s15
    %p12 = scmp.ge.s32.totalorder %s11, 4
    %s18 = sphi 0, %s30
    %s19 = sphi 0, %s26
    %s20 = sphi 0, %s18
    %s21 = sphi 0, %s19
    %s22 = sphi 0, %s20
    %s23 = sphi 0, %s21
    %s33 = sphi 0, %s35
    %s36 = sphi 0, %s33
    %s37 = sphi 0, %s36
    %s53 = sphi 0, %s37
    %s57 = sphi 0, %s57
    %s59 = sphi 0, %s57
    %s60 = sphi 0, %s59
    %s74 = sphi 0, %s60
    %s78 = sphi 0, %s78
    %s80 = sphi 0, %s78
    %s81 = sphi 0, %s80
    %s95 = sphi 0, %s81
    %s99 = sphi 0, %s99
    %s101 = sphi 0, %s99
    %s102 = sphi 0, %s101
    %s116 = sphi 0, %s102
    %s120 = sphi 0, %s120
    %s122 = sphi 0, %s120
    %s123 = sphi 0, %s122
    %s137 = sphi 0, %s123
    %s145 = sphi 0, %s147
    %s148 = sphi 0, %s145
    %s149 = sphi 0, %s148
    %s165 = sphi 0, %s149
  $region4: #{tpu_custom_call.1} parent=0 // loop_header_branch
    %14 = sbr.rel (%p12) target = $region8
  $region5: #{tpu_custom_call.1} parent=0 // loop_body
    %s16 = ssub.s32 %s11, 1
    %s17 = ssub.s32 %s11, 2
    %s24 = sadd.s32 1, %s19
    %p25 = scmp.ge.s32.totalorder %s24, 1
    %s26 = scalar_select %p25, 0, %s24
    %s27 = sadd.s32 1, %s18
    %s28 = scalar_select %p25, %s27, %s18
    %p29 = scmp.ge.s32.totalorder %s28, 2
    %s30 = scalar_select %p29, 0, %s28
    %s31 = ssub.s32 %s18, %s30
    %p32 = scmp.eq.s32.totalorder %s31, 0
    %s34 = sadd.s32 %s33, 1
    %s35 = scalar_select %p32, %s33, %s34
    %p38 = pneg %p32
    %p39 = scmp.eq.s32.totalorder %s11, 1
    %p40 = por %p38, %p39
    %p41 = scmp.ne.s32.totalorder %s33, %s36
    %p42 = scmp.eq.s32.totalorder %s11, 0
    %p43 = por %p41, %p42
    %p44 = scmp.ne.s32.totalorder %s33, %s36
    %p45 = scmp.eq.s32.totalorder %s16, 1
    %p46 = por %p44, %p45
    %p47 = scmp.ne.s32.totalorder %s36, %s37
    %p48 = scmp.eq.s32.totalorder %s16, 0
    %p49 = por %p47, %p48
    %p50 = scmp.ne.s32.totalorder %s36, %s37
    %p51 = scmp.eq.s32.totalorder %s17, 1
    %p52 = por %p50, %p51
    %p54 = scmp.ne.s32.totalorder %s37, %s53
    %p55 = scmp.eq.s32.totalorder %s17, 0
    %p56 = por %p54, %p55
    %s58 = sadd.s32 %s57, 1
    %p61 = scmp.eq.s32.totalorder %s11, 1
    %p62 = scmp.ne.s32.totalorder %s57, %s59
    %p63 = scmp.eq.s32.totalorder %s11, 0
    %p64 = por %p62, %p63
    %p65 = scmp.ne.s32.totalorder %s57, %s59
    %p66 = scmp.eq.s32.totalorder %s16, 1
    %p67 = por %p65, %p66
    %p68 = scmp.ne.s32.totalorder %s59, %s60
    %p69 = scmp.eq.s32.totalorder %s16, 0
    %p70 = por %p68, %p69
    %p71 = scmp.ne.s32.totalorder %s59, %s60
    %p72 = scmp.eq.s32.totalorder %s17, 1
    %p73 = por %p71, %p72
    %p75 = scmp.ne.s32.totalorder %s60, %s74
    %p76 = scmp.eq.s32.totalorder %s17, 0
    %p77 = por %p75, %p76
    %s79 = sadd.s32 %s78, 1
    %p82 = scmp.eq.s32.totalorder %s11, 1
    %p83 = scmp.ne.s32.totalorder %s78, %s80
    %p84 = scmp.eq.s32.totalorder %s11, 0
    %p85 = por %p83, %p84
    %p86 = scmp.ne.s32.totalorder %s78, %s80
    %p87 = scmp.eq.s32.totalorder %s16, 1
    %p88 = por %p86, %p87
    %p89 = scmp.ne.s32.totalorder %s80, %s81
    %p90 = scmp.eq.s32.totalorder %s16, 0
    %p91 = por %p89, %p90
    %p92 = scmp.ne.s32.totalorder %s80, %s81
    %p93 = scmp.eq.s32.totalorder %s17, 1
    %p94 = por %p92, %p93
    %p96 = scmp.ne.s32.totalorder %s81, %s95
    %p97 = scmp.eq.s32.totalorder %s17, 0
    %p98 = por %p96, %p97
    %s100 = sadd.s32 %s99, 1
    %p103 = scmp.eq.s32.totalorder %s11, 1
    %p104 = scmp.ne.s32.totalorder %s99, %s101
    %p105 = scmp.eq.s32.totalorder %s11, 0
    %p106 = por %p104, %p105
    %p107 = scmp.ne.s32.totalorder %s99, %s101
    %p108 = scmp.eq.s32.totalorder %s16, 1
    %p109 = por %p107, %p108
    %p110 = scmp.ne.s32.totalorder %s101, %s102
    %p111 = scmp.eq.s32.totalorder %s16, 0
    %p112 = por %p110, %p111
    %p113 = scmp.ne.s32.totalorder %s101, %s102
    %p114 = scmp.eq.s32.totalorder %s17, 1
    %p115 = por %p113, %p114
    %p117 = scmp.ne.s32.totalorder %s102, %s116
    %p118 = scmp.eq.s32.totalorder %s17, 0
    %p119 = por %p117, %p118
    %s121 = sadd.s32 %s120, 1
    %p124 = scmp.eq.s32.totalorder %s11, 1
    %p125 = scmp.ne.s32.totalorder %s120, %s122
    %p126 = scmp.eq.s32.totalorder %s11, 0
    %p127 = por %p125, %p126
    %p128 = scmp.ne.s32.totalorder %s120, %s122
    %p129 = scmp.eq.s32.totalorder %s16, 1
    %p130 = por %p128, %p129
    %p131 = scmp.ne.s32.totalorder %s122, %s123
    %p132 = scmp.eq.s32.totalorder %s16, 0
    %p133 = por %p131, %p132
    %p134 = scmp.ne.s32.totalorder %s122, %s123
    %p135 = scmp.eq.s32.totalorder %s17, 1
    %p136 = por %p134, %p135
    %p138 = scmp.ne.s32.totalorder %s123, %s137
    %p139 = scmp.eq.s32.totalorder %s17, 0
    %p140 = por %p138, %p139
    %s141 = ssub.s32 %s18, %s30
    %s142 = ssub.s32 %s19, %s26
    %s143 = sor.u32 %s141, %s142
    %p144 = scmp.eq.s32.totalorder %s143, 0
    %s146 = sadd.s32 %s145, 1
    %s147 = scalar_select %p144, %s145, %s146
    %p150 = pneg %p144
    %p151 = scmp.eq.s32.totalorder %s11, 1
    %p152 = por %p150, %p151
    %p153 = scmp.ne.s32.totalorder %s145, %s148
    %p154 = scmp.eq.s32.totalorder %s11, 0
    %p155 = por %p153, %p154
    %p156 = scmp.ne.s32.totalorder %s145, %s148
    %p157 = scmp.eq.s32.totalorder %s16, 1
    %p158 = por %p156, %p157
    %p159 = scmp.ne.s32.totalorder %s148, %s149
    %p160 = scmp.eq.s32.totalorder %s16, 0
    %p161 = por %p159, %p160
    %p162 = scmp.ne.s32.totalorder %s148, %s149
    %p163 = scmp.eq.s32.totalorder %s17, 1
    %p164 = por %p162, %p163
    %p166 = scmp.ne.s32.totalorder %s149, %s165
    %p167 = scmp.eq.s32.totalorder %s17, 0
    %p168 = por %p166, %p167
    %p169 = scmp.le.s32.totalorder 1, %s11
    %p170 = scmp.lt.s32.totalorder %s11, 3
    %p171 = pnand %p169, %p170
    %p172 = pneg %p171
    // Predicated region
    $region9: #{tpu_custom_call.1} parent=5 // pred_check
      _
    $region10: #{tpu_custom_call.1} parent=5 // pred_check_branch
      %174 = sbr.rel (%p171) target = $region12
    $region11: #{tpu_custom_call.1} parent=5 // pred_region
      %s175 = ssub.s32 %s11, 1
      // Predicated region
      $region13: #{tpu_custom_call.1} parent=11 // pred_check
        %p176 = pneg %p70
      $region14: #{tpu_custom_call.1} parent=11 // pred_check_branch
        %178 = sbr.rel (%p176) target = $region16
      $region15: #{tpu_custom_call.1} parent=11 // pred_region
        _
      $region16: #{tpu_custom_call.1} parent=11 // pred_fallthru
        _
      // Predicated region
      $region17: #{tpu_custom_call.1} parent=11 // pred_check
        %p179 = pneg %p91
      $region18: #{tpu_custom_call.1} parent=11 // pred_check_branch
        %181 = sbr.rel (%p179) target = $region20
      $region19: #{tpu_custom_call.1} parent=11 // pred_region
        _
      $region20: #{tpu_custom_call.1} parent=11 // pred_fallthru
        _
      // Predicated region
      $region21: #{tpu_custom_call.1} parent=11 // pred_check
        %p182 = pneg %p112
      $region22: #{tpu_custom_call.1} parent=11 // pred_check_branch
        %184 = sbr.rel (%p182) target = $region24
      $region23: #{tpu_custom_call.1} parent=11 // pred_region
        _
      $region24: #{tpu_custom_call.1} parent=11 // pred_fallthru
        _
      // Predicated region
      $region25: #{tpu_custom_call.1} parent=11 // pred_check
        %p185 = pneg %p133
      $region26: #{tpu_custom_call.1} parent=11 // pred_check_branch
        %187 = sbr.rel (%p185) target = $region28
      $region27: #{tpu_custom_call.1} parent=11 // pred_region
        _
      $region28: #{tpu_custom_call.1} parent=11 // pred_fallthru
        _
    $region12: #{tpu_custom_call.1} parent=5 // pred_fallthru
      _
    %p188 = scmp.lt.s32.totalorder %s11, 2
    // Predicated region
    $region29: #{tpu_custom_call.1} parent=5 // pred_check
      %p189 = pneg %p188
    $region30: #{tpu_custom_call.1} parent=5 // pred_check_branch
      %191 = sbr.rel (%p189) target = $region32
    $region31: #{tpu_custom_call.1} parent=5 // pred_region
      // Predicated region
      $region33: #{tpu_custom_call.1} parent=31 // pred_check
        %p192 = pneg %p43
      $region34: #{tpu_custom_call.1} parent=31 // pred_check_branch
        %194 = sbr.rel (%p192) target = $region36
      $region35: #{tpu_custom_call.1} parent=31 // pred_region
        %p195 = scmp.lt.s32.totalorder %s18, 1
        %s196 = scalar_select %p195, %s18, 1
        %s197 = smul.addr %s196, 32
        %s198 = smul.addr %s197, 8
        %s199 = scalar_lea.vmem %s0, %s198
      $region36: #{tpu_custom_call.1} parent=31 // pred_fallthru
        _
    $region32: #{tpu_custom_call.1} parent=5 // pred_fallthru
      _
    %p200 = scmp.le.s32.totalorder 1, %s11
    %p201 = scmp.lt.s32.totalorder %s11, 3
    %p202 = pnand %p200, %p201
    %p203 = pneg %p202
    // Predicated region
    $region37: #{tpu_custom_call.1} parent=5 // pred_check
      _
    $region38: #{tpu_custom_call.1} parent=5 // pred_check_branch
      %205 = sbr.rel (%p202) target = $region40
    $region39: #{tpu_custom_call.1} parent=5 // pred_region
      %s206 = ssub.s32 %s11, 1
      %p207 = scmp.lt.s32.totalorder %s20, 1
      %s208 = scalar_select %p207, %s20, 1
      %s209 = smul.addr %s208, 32
      %s210 = smul.addr %s209, 8
      %s211 = scalar_lea.vmem %s0, %s210
      %p212 = pneg %p49
      %p213 = pneg %p46
      %p214 = pneg %p70
      %p215 = pneg %p67
      %p216 = pneg %p91
      %p217 = pneg %p88
      %p218 = pneg %p112
      %p219 = pneg %p109
      %p220 = pneg %p133
      %p221 = pneg %p130
      %p222 = pneg %p161
      %p223 = pneg %p158
      %s224 = smul.u32 32, %s21
      %p225 = scmp.lt.s32.totalorder %s20, 1
      %s226 = scalar_select %p225, %s20, 1
      %p227 = scmp.lt.s32.totalorder %s224, 31
      %s228 = scalar_select %p227, %s224, 31
      %s229 = smul.addr %s226, 32
      %s230 = sadd.s32 %s228, %s229
      %s231 = smul.addr %s230, 8
      %s232 = scalar_lea.vmem %s5, %s231
      %p233 = scmp.lt.s32.totalorder %s20, 1
      %s234 = scalar_select %p233, %s20, 1
      %s235 = smul.addr %s234, 32
      %s236 = smul.addr %s235, 8
      %s237 = scalar_lea.vmem %s0, %s236
      %s238 = smul.u32 32, %s21
      %p239 = scmp.lt.s32.totalorder %s20, 1
      %s240 = scalar_select %p239, %s20, 1
      %p241 = scmp.lt.s32.totalorder %s238, 31
      %s242 = scalar_select %p241, %s238, 31
      %s243 = smul.addr %s240, 32
      %s244 = sadd.s32 %s242, %s243
      %s245 = smul.addr %s244, 8
      %s246 = scalar_lea.vmem %s5, %s245
      %s247 = smul.u32 32, %s21
      %p249 = scmp.eq.s32.totalorder %s21, 0
      // Predicated region
      $region41: #{tpu_custom_call.1} parent=39 // pred_check
        %p250 = pneg %p249
      $region42: #{tpu_custom_call.1} parent=39 // pred_check_branch
        %252 = sbr.rel (%p250) target = $region44
      $region43: #{tpu_custom_call.1} parent=39 // pred_region
        %v253 = vld [vmem:[%s237] sm:$0xff]
        %v254 = vld [vmem:[%s237 + $0x8] sm:$0xff]
        %v255 = vld [vmem:[%s237 + $0x10] sm:$0xff]
        %v256 = vld [vmem:[%s237 + $0x18] sm:$0xff]
        %v257 = vld [vmem:[%s237 + $0x20] sm:$0xff]
        %v258 = vld [vmem:[%s237 + $0x28] sm:$0xff]
        %v259 = vld [vmem:[%s237 + $0x30] sm:$0xff]
        %v260 = vld [vmem:[%s237 + $0x38] sm:$0xff]
        %v261 = vld [vmem:[%s237 + $0x40] sm:$0xff]
        %v262 = vld [vmem:[%s237 + $0x48] sm:$0xff]
        %v263 = vld [vmem:[%s237 + $0x50] sm:$0xff]
        %v264 = vld [vmem:[%s237 + $0x58] sm:$0xff]
        %v265 = vld [vmem:[%s237 + $0x60] sm:$0xff]
        %v266 = vld [vmem:[%s237 + $0x68] sm:$0xff]
        %v267 = vld [vmem:[%s237 + $0x70] sm:$0xff]
        %v268 = vld [vmem:[%s237 + $0x78] sm:$0xff]
        %v269 = vld [vmem:[%s237 + $0x80] sm:$0xff]
        %v270 = vld [vmem:[%s237 + $0x88] sm:$0xff]
        %v271 = vld [vmem:[%s237 + $0x90] sm:$0xff]
        %v272 = vld [vmem:[%s237 + $0x98] sm:$0xff]
        %v273 = vld [vmem:[%s237 + $0xa0] sm:$0xff]
        %v274 = vld [vmem:[%s237 + $0xa8] sm:$0xff]
        %v275 = vld [vmem:[%s237 + $0xb0] sm:$0xff]
        %v276 = vld [vmem:[%s237 + $0xb8] sm:$0xff]
        %v277 = vld [vmem:[%s237 + $0xc0] sm:$0xff]
        %v278 = vld [vmem:[%s237 + $0xc8] sm:$0xff]
        %v279 = vld [vmem:[%s237 + $0xd0] sm:$0xff]
        %v280 = vld [vmem:[%s237 + $0xd8] sm:$0xff]
        %v281 = vld [vmem:[%s237 + $0xe0] sm:$0xff]
        %v282 = vld [vmem:[%s237 + $0xe8] sm:$0xff]
        %v283 = vld [vmem:[%s237 + $0xf0] sm:$0xff]
        %v284 = vld [vmem:[%s237 + $0xf8] sm:$0xff]
        %v285 = vpack.c.bf16 %v254, %v253
        %v286 = vpack.c.bf16 %v256, %v255
        %v287 = vpack.c.bf16 %v258, %v257
        %v288 = vpack.c.bf16 %v260, %v259
        %v289 = vpack.c.bf16 %v262, %v261
        %v290 = vpack.c.bf16 %v264, %v263
        %v291 = vpack.c.bf16 %v266, %v265
        %v292 = vpack.c.bf16 %v268, %v267
        %v293 = vpack.c.bf16 %v270, %v269
        %v294 = vpack.c.bf16 %v272, %v271
        %v295 = vpack.c.bf16 %v274, %v273
        %v296 = vpack.c.bf16 %v276, %v275
        %v297 = vpack.c.bf16 %v278, %v277
        %v298 = vpack.c.bf16 %v280, %v279
        %v299 = vpack.c.bf16 %v282, %v281
        %v300 = vpack.c.bf16 %v284, %v283
        %v301 = vld [vmem:[%s1] sm:$0x3]
        %v302 = vld [vmem:[%s2] sm:$0x1]
        %v304 = vlaneseq
        %v305 = vshrl.u32 %v304, 7
        %v306 = vsub.s32 0, %v305
        %v307 = vrot.slane %v302, %v306
        %vm309 = vcmask 31744
        %v311 = vsel %vm309, %v285, 0
        %v314 = vsel %vm309, %v286, 0
        %v317 = vsel %vm309, %v287, 0
        %v320 = vsel %vm309, %v288, 0
        %v323 = vsel %vm309, %v289, 0
        %v326 = vsel %vm309, %v290, 0
        %v329 = vsel %vm309, %v291, 0
        %v332 = vsel %vm309, %v292, 0
        %v335 = vsel %vm309, %v293, 0
        %v338 = vsel %vm309, %v294, 0
        %v341 = vsel %vm309, %v295, 0
        %v344 = vsel %vm309, %v296, 0
        %v347 = vsel %vm309, %v297, 0
        %v350 = vsel %vm309, %v298, 0
        %v353 = vsel %vm309, %v299, 0
        %v356 = vsel %vm309, %v300, 0
        %vm358 = vcmask 1041408
        %v360 = vsel %vm358, %v301, 0
        %362 = vmatprep.subr.bf16.mxu0 0
        %363 = vmatpush1.bf16.msra.mxu0 0
        %364 = vmatprep.subr.bf16.mxu0 0
        %365 = vmatpush1.bf16.msra.mxu0 0
        %366 = vmatprep.subr.bf16.mxu0 0
        %367 = vmatpush1.bf16.msra.mxu0 0
        %368 = vmatprep.subr.bf16.mxu0 0
        %369 = vmatpush1.bf16.msra.mxu0 0
        %370 = vmatprep.subr.bf16.mxu0 0
        %371 = vmatpush1.bf16.msra.mxu0 0
        %372 = vmatprep.subr.bf16.mxu0 0
        %373 = vmatpush1.bf16.msra.mxu0 0
        %374 = vmatprep.subr.bf16.mxu0 0
        %375 = vmatpush1.bf16.msra.mxu0 0
        %376 = vmatprep.subr.bf16.mxu0 0
        %377 = vmatpush1.bf16.msra.mxu0 %v360
        %378 = vmatprep.subr.bf16.mxu0 0
        %379 = vmatpush2.bf16.msra.mxu0 0
        %380 = vmatprep.subr.bf16.mxu0 0
        %381 = vmatpush2.bf16.msra.mxu0 0
        %382 = vmatprep.subr.bf16.mxu0 0
        %383 = vmatpush2.bf16.msra.mxu0 0
        %384 = vmatprep.subr.bf16.mxu0 0
        %385 = vmatpush2.bf16.msra.mxu0 0
        %386 = vmatprep.subr.bf16.mxu0 0
        %387 = vmatpush2.bf16.msra.mxu0 0
        %388 = vmatprep.subr.bf16.mxu0 0
        %389 = vmatpush2.bf16.msra.mxu0 0
        %390 = vmatprep.subr.bf16.mxu0 0
        %391 = vmatpush2.bf16.msra.mxu0 0
        %392 = vmatprep.subr.bf16.mxu0 0
        %393 = vmatpush2.bf16.msra.mxu0 0
        %394 = vmatprep.mubr.bf16.mxu0 0
        %395 = vmatmul.mubr.bf16.gmra.mxu0 %v311
        %v396 = vpop.f32.mrf.mxu0
        %v397 = vadd.f32 %v307, %v396
        %v398 = vpop.f32.mrf.mxu0
        %v399 = vpop.f32.mrf.mxu0
        %v400 = vadd.f32 %v307, %v399
        %v401 = vpop.f32.mrf.mxu0
        %402 = vmatprep.mubr.bf16.mxu0 0
        %403 = vmatmul.mubr.bf16.gmra.mxu0 %v314
        %v404 = vpop.f32.mrf.mxu0
        %v405 = vadd.f32 %v307, %v404
        %v406 = vpop.f32.mrf.mxu0
        %v407 = vpop.f32.mrf.mxu0
        %v408 = vadd.f32 %v307, %v407
        %v409 = vpop.f32.mrf.mxu0
        %410 = vmatprep.mubr.bf16.mxu0 0
        %411 = vmatmul.mubr.bf16.gmra.mxu0 %v317
        %v412 = vpop.f32.mrf.mxu0
        %v413 = vadd.f32 %v307, %v412
        %v414 = vpop.f32.mrf.mxu0
        %v415 = vpop.f32.mrf.mxu0
        %v416 = vadd.f32 %v307, %v415
        %v417 = vpop.f32.mrf.mxu0
        %418 = vmatprep.mubr.bf16.mxu0 0
        %419 = vmatmul.mubr.bf16.gmra.mxu0 %v320
        %v420 = vpop.f32.mrf.mxu0
        %v421 = vadd.f32 %v307, %v420
        %v422 = vpop.f32.mrf.mxu0
        %v423 = vpop.f32.mrf.mxu0
        %v424 = vadd.f32 %v307, %v423
        %v425 = vpop.f32.mrf.mxu0
        %426 = vmatprep.mubr.bf16.mxu0 0
        %427 = vmatmul.mubr.bf16.gmra.mxu0 %v323
        %v428 = vpop.f32.mrf.mxu0
        %v429 = vadd.f32 %v307, %v428
        %v430 = vpop.f32.mrf.mxu0
        %v431 = vpop.f32.mrf.mxu0
        %v432 = vadd.f32 %v307, %v431
        %v433 = vpop.f32.mrf.mxu0
        %434 = vmatprep.mubr.bf16.mxu0 0
        %435 = vmatmul.mubr.bf16.gmra.mxu0 %v326
        %v436 = vpop.f32.mrf.mxu0
        %v437 = vadd.f32 %v307, %v436
        %v438 = vpop.f32.mrf.mxu0
        %v439 = vpop.f32.mrf.mxu0
        %v440 = vadd.f32 %v307, %v439
        %v441 = vpop.f32.mrf.mxu0
        %442 = vmatprep.mubr.bf16.mxu0 0
        %443 = vmatmul.mubr.bf16.gmra.mxu0 %v329
        %v444 = vpop.f32.mrf.mxu0
        %v445 = vadd.f32 %v307, %v444
        %v446 = vpop.f32.mrf.mxu0
        %v447 = vpop.f32.mrf.mxu0
        %v448 = vadd.f32 %v307, %v447
        %v449 = vpop.f32.mrf.mxu0
        %450 = vmatprep.mubr.bf16.mxu0 0
        %451 = vmatmul.mubr.bf16.gmra.mxu0 %v332
        %v452 = vpop.f32.mrf.mxu0
        %v453 = vadd.f32 %v307, %v452
        %v454 = vpop.f32.mrf.mxu0
        %v455 = vpop.f32.mrf.mxu0
        %v456 = vadd.f32 %v307, %v455
        %v457 = vpop.f32.mrf.mxu0
        %458 = vmatprep.mubr.bf16.mxu0 0
        %459 = vmatmul.mubr.bf16.gmra.mxu0 %v335
        %v460 = vpop.f32.mrf.mxu0
        %v461 = vadd.f32 %v307, %v460
        %v462 = vpop.f32.mrf.mxu0
        %v463 = vpop.f32.mrf.mxu0
        %v464 = vadd.f32 %v307, %v463
        %v465 = vpop.f32.mrf.mxu0
        %466 = vmatprep.mubr.bf16.mxu0 0
        %467 = vmatmul.mubr.bf16.gmra.mxu0 %v338
        %v468 = vpop.f32.mrf.mxu0
        %v469 = vadd.f32 %v307, %v468
        %v470 = vpop.f32.mrf.mxu0
        %v471 = vpop.f32.mrf.mxu0
        %v472 = vadd.f32 %v307, %v471
        %v473 = vpop.f32.mrf.mxu0
        %474 = vmatprep.mubr.bf16.mxu0 0
        %475 = vmatmul.mubr.bf16.gmra.mxu0 %v341
        %v476 = vpop.f32.mrf.mxu0
        %v477 = vadd.f32 %v307, %v476
        %v478 = vpop.f32.mrf.mxu0
        %v479 = vpop.f32.mrf.mxu0
        %v480 = vadd.f32 %v307, %v479
        %v481 = vpop.f32.mrf.mxu0
        %482 = vmatprep.mubr.bf16.mxu0 0
        %483 = vmatmul.mubr.bf16.gmra.mxu0 %v344
        %v484 = vpop.f32.mrf.mxu0
        %v485 = vadd.f32 %v307, %v484
        %v486 = vpop.f32.mrf.mxu0
        %v487 = vpop.f32.mrf.mxu0
        %v488 = vadd.f32 %v307, %v487
        %v489 = vpop.f32.mrf.mxu0
        %490 = vmatprep.mubr.bf16.mxu0 0
        %491 = vmatmul.mubr.bf16.gmra.mxu0 %v347
        %v492 = vpop.f32.mrf.mxu0
        %v493 = vadd.f32 %v307, %v492
        %v494 = vpop.f32.mrf.mxu0
        %v495 = vpop.f32.mrf.mxu0
        %v496 = vadd.f32 %v307, %v495
        %v497 = vpop.f32.mrf.mxu0
        %498 = vmatprep.mubr.bf16.mxu0 0
        %499 = vmatmul.mubr.bf16.gmra.mxu0 %v350
        %v500 = vpop.f32.mrf.mxu0
        %v501 = vadd.f32 %v307, %v500
        %v502 = vpop.f32.mrf.mxu0
        %v503 = vpop.f32.mrf.mxu0
        %v504 = vadd.f32 %v307, %v503
        %v505 = vpop.f32.mrf.mxu0
        %506 = vmatprep.mubr.bf16.mxu0 0
        %507 = vmatmul.mubr.bf16.gmra.mxu0 %v353
        %v508 = vpop.f32.mrf.mxu0
        %v509 = vadd.f32 %v307, %v508
        %v510 = vpop.f32.mrf.mxu0
        %v511 = vpop.f32.mrf.mxu0
        %v512 = vadd.f32 %v307, %v511
        %v513 = vpop.f32.mrf.mxu0
        %514 = vmatprep.mubr.bf16.mxu0 0
        %515 = vmatmul.mubr.bf16.gmra.mxu0 %v356
        %v516 = vpop.f32.mrf.mxu0
        %v517 = vadd.f32 %v307, %v516
        %v518 = vpop.f32.mrf.mxu0
        %v519 = vpop.f32.mrf.mxu0
        %v520 = vadd.f32 %v307, %v519
        %v521 = vpop.f32.mrf.mxu0
        %522 = vdwg.mxu0
        %v523 = vpack.c.bf16 %v400, %v397
        %v524 = vpack.c.bf16 %v408, %v405
        %v525 = vpack.c.bf16 %v416, %v413
        %v526 = vpack.c.bf16 %v424, %v421
        %v527 = vpack.c.bf16 %v432, %v429
        %v528 = vpack.c.bf16 %v440, %v437
        %v529 = vpack.c.bf16 %v448, %v445
        %v530 = vpack.c.bf16 %v456, %v453
        %v531 = vpack.c.bf16 %v464, %v461
        %v532 = vpack.c.bf16 %v472, %v469
        %v533 = vpack.c.bf16 %v480, %v477
        %v534 = vpack.c.bf16 %v488, %v485
        %v535 = vpack.c.bf16 %v496, %v493
        %v536 = vpack.c.bf16 %v504, %v501
        %v537 = vpack.c.bf16 %v512, %v509
        %v538 = vpack.c.bf16 %v520, %v517
        %v555 = vunpack.c.l.b16 %v523
        %v556 = vunpack.c.h.b16 %v523
        %v557 = vunpack.c.l.b16 %v524
        %v558 = vunpack.c.h.b16 %v524
        %v559 = vunpack.c.l.b16 %v525
        %v560 = vunpack.c.h.b16 %v525
        %v561 = vunpack.c.l.b16 %v526
        %v562 = vunpack.c.h.b16 %v526
        %v563 = vunpack.c.l.b16 %v527
        %v564 = vunpack.c.h.b16 %v527
        %v565 = vunpack.c.l.b16 %v528
        %v566 = vunpack.c.h.b16 %v528
        %v567 = vunpack.c.l.b16 %v529
        %v568 = vunpack.c.h.b16 %v529
        %v569 = vunpack.c.l.b16 %v530
        %v570 = vunpack.c.h.b16 %v530
        %v571 = vunpack.c.l.b16 %v531
        %v572 = vunpack.c.h.b16 %v531
        %v573 = vunpack.c.l.b16 %v532
        %v574 = vunpack.c.h.b16 %v532
        %v575 = vunpack.c.l.b16 %v533
        %v576 = vunpack.c.h.b16 %v533
        %v577 = vunpack.c.l.b16 %v534
        %v578 = vunpack.c.h.b16 %v534
        %v579 = vunpack.c.l.b16 %v535
        %v580 = vunpack.c.h.b16 %v535
        %v581 = vunpack.c.l.b16 %v536
        %v582 = vunpack.c.h.b16 %v536
        %v583 = vunpack.c.l.b16 %v537
        %v584 = vunpack.c.h.b16 %v537
        %v585 = vunpack.c.l.b16 %v538
        %v586 = vunpack.c.h.b16 %v538
        %v587 = vpack.c.b16 %v555, %v555
        %v588 = vpack.c.b16 %v556, %v556
        %v589 = vpack.c.b16 %v557, %v557
        %v590 = vpack.c.b16 %v558, %v558
        %v591 = vpack.c.b16 %v559, %v559
        %v592 = vpack.c.b16 %v560, %v560
        %v593 = vpack.c.b16 %v561, %v561
        %v594 = vpack.c.b16 %v562, %v562
        %v595 = vpack.c.b16 %v563, %v563
        %v596 = vpack.c.b16 %v564, %v564
        %v597 = vpack.c.b16 %v565, %v565
        %v598 = vpack.c.b16 %v566, %v566
        %v599 = vpack.c.b16 %v567, %v567
        %v600 = vpack.c.b16 %v568, %v568
        %v601 = vpack.c.b16 %v569, %v569
        %v602 = vpack.c.b16 %v570, %v570
        %v603 = vpack.c.b16 %v571, %v571
        %v604 = vpack.c.b16 %v572, %v572
        %v605 = vpack.c.b16 %v573, %v573
        %v606 = vpack.c.b16 %v574, %v574
        %v607 = vpack.c.b16 %v575, %v575
        %v608 = vpack.c.b16 %v576, %v576
        %v609 = vpack.c.b16 %v577, %v577
        %v610 = vpack.c.b16 %v578, %v578
        %v611 = vpack.c.b16 %v579, %v579
        %v612 = vpack.c.b16 %v580, %v580
        %v613 = vpack.c.b16 %v581, %v581
        %v614 = vpack.c.b16 %v582, %v582
        %v615 = vpack.c.b16 %v583, %v583
        %v616 = vpack.c.b16 %v584, %v584
        %v617 = vpack.c.b16 %v585, %v585
        %v618 = vpack.c.b16 %v586, %v586
        %vm651 = vcmask 93184
        %652 = vst.msk [vmem:[#allocation2] sm:$0xf] %vm651, %v587
        %653 = vst.msk [vmem:[#allocation2 + $0x4] sm:$0xf] %vm651, %v588
        %654 = vst.msk [vmem:[#allocation2 + $0x8] sm:$0xf] %vm651, %v589
        %655 = vst.msk [vmem:[#allocation2 + $0xc] sm:$0xf] %vm651, %v590
        %656 = vst.msk [vmem:[#allocation2 + $0x10] sm:$0xf] %vm651, %v591
        %657 = vst.msk [vmem:[#allocation2 + $0x14] sm:$0xf] %vm651, %v592
        %658 = vst.msk [vmem:[#allocation2 + $0x18] sm:$0xf] %vm651, %v593
        %659 = vst.msk [vmem:[#allocation2 + $0x1c] sm:$0xf] %vm651, %v594
        %660 = vst.msk [vmem:[#allocation2 + $0x20] sm:$0xf] %vm651, %v595
        %661 = vst.msk [vmem:[#allocation2 + $0x24] sm:$0xf] %vm651, %v596
        %662 = vst.msk [vmem:[#allocation2 + $0x28] sm:$0xf] %vm651, %v597
        %663 = vst.msk [vmem:[#allocation2 + $0x2c] sm:$0xf] %vm651, %v598
        %664 = vst.msk [vmem:[#allocation2 + $0x30] sm:$0xf] %vm651, %v599
        %665 = vst.msk [vmem:[#allocation2 + $0x34] sm:$0xf] %vm651, %v600
        %666 = vst.msk [vmem:[#allocation2 + $0x38] sm:$0xf] %vm651, %v601
        %667 = vst.msk [vmem:[#allocation2 + $0x3c] sm:$0xf] %vm651, %v602
        %668 = vst.msk [vmem:[#allocation2 + $0x40] sm:$0xf] %vm651, %v603
        %669 = vst.msk [vmem:[#allocation2 + $0x44] sm:$0xf] %vm651, %v604
        %670 = vst.msk [vmem:[#allocation2 + $0x48] sm:$0xf] %vm651, %v605
        %671 = vst.msk [vmem:[#allocation2 + $0x4c] sm:$0xf] %vm651, %v606
        %672 = vst.msk [vmem:[#allocation2 + $0x50] sm:$0xf] %vm651, %v607
        %673 = vst.msk [vmem:[#allocation2 + $0x54] sm:$0xf] %vm651, %v608
        %674 = vst.msk [vmem:[#allocation2 + $0x58] sm:$0xf] %vm651, %v609
        %675 = vst.msk [vmem:[#allocation2 + $0x5c] sm:$0xf] %vm651, %v610
        %676 = vst.msk [vmem:[#allocation2 + $0x60] sm:$0xf] %vm651, %v611
        %677 = vst.msk [vmem:[#allocation2 + $0x64] sm:$0xf] %vm651, %v612
        %678 = vst.msk [vmem:[#allocation2 + $0x68] sm:$0xf] %vm651, %v613
        %679 = vst.msk [vmem:[#allocation2 + $0x6c] sm:$0xf] %vm651, %v614
        %680 = vst.msk [vmem:[#allocation2 + $0x70] sm:$0xf] %vm651, %v615
        %681 = vst.msk [vmem:[#allocation2 + $0x74] sm:$0xf] %vm651, %v616
        %682 = vst.msk [vmem:[#allocation2 + $0x78] sm:$0xf] %vm651, %v617
        %683 = vst.msk [vmem:[#allocation2 + $0x7c] sm:$0xf] %vm651, %v618
      $region44: #{tpu_custom_call.1} parent=39 // pred_fallthru
        _
      %v684 = vld [vmem:[#allocation2] sm:$0xf]
      %v685 = vld [vmem:[#allocation2 + $0x4] sm:$0xf]
      %v686 = vld [vmem:[#allocation2 + $0x8] sm:$0xf]
      %v687 = vld [vmem:[#allocation2 + $0xc] sm:$0xf]
      %v688 = vld [vmem:[#allocation2 + $0x10] sm:$0xf]
      %v689 = vld [vmem:[#allocation2 + $0x14] sm:$0xf]
      %v690 = vld [vmem:[#allocation2 + $0x18] sm:$0xf]
      %v691 = vld [vmem:[#allocation2 + $0x1c] sm:$0xf]
      %v692 = vld [vmem:[#allocation2 + $0x20] sm:$0xf]
      %v693 = vld [vmem:[#allocation2 + $0x24] sm:$0xf]
      %v694 = vld [vmem:[#allocation2 + $0x28] sm:$0xf]
      %v695 = vld [vmem:[#allocation2 + $0x2c] sm:$0xf]
      %v696 = vld [vmem:[#allocation2 + $0x30] sm:$0xf]
      %v697 = vld [vmem:[#allocation2 + $0x34] sm:$0xf]
      %v698 = vld [vmem:[#allocation2 + $0x38] sm:$0xf]
      %v699 = vld [vmem:[#allocation2 + $0x3c] sm:$0xf]
      %v700 = vld [vmem:[#allocation2 + $0x40] sm:$0xf]
      %v701 = vld [vmem:[#allocation2 + $0x44] sm:$0xf]
      %v702 = vld [vmem:[#allocation2 + $0x48] sm:$0xf]
      %v703 = vld [vmem:[#allocation2 + $0x4c] sm:$0xf]
      %v704 = vld [vmem:[#allocation2 + $0x50] sm:$0xf]
      %v705 = vld [vmem:[#allocation2 + $0x54] sm:$0xf]
      %v706 = vld [vmem:[#allocation2 + $0x58] sm:$0xf]
      %v707 = vld [vmem:[#allocation2 + $0x5c] sm:$0xf]
      %v708 = vld [vmem:[#allocation2 + $0x60] sm:$0xf]
      %v709 = vld [vmem:[#allocation2 + $0x64] sm:$0xf]
      %v710 = vld [vmem:[#allocation2 + $0x68] sm:$0xf]
      %v711 = vld [vmem:[#allocation2 + $0x6c] sm:$0xf]
      %v712 = vld [vmem:[#allocation2 + $0x70] sm:$0xf]
      %v713 = vld [vmem:[#allocation2 + $0x74] sm:$0xf]
      %v714 = vld [vmem:[#allocation2 + $0x78] sm:$0xf]
      %v715 = vld [vmem:[#allocation2 + $0x7c] sm:$0xf]
      %v748 = vunpack.c.l.b16 %v684
      %v749 = vunpack.c.l.b16 %v685
      %v750 = vunpack.c.l.b16 %v686
      %v751 = vunpack.c.l.b16 %v687
      %v752 = vunpack.c.l.b16 %v688
      %v753 = vunpack.c.l.b16 %v689
      %v754 = vunpack.c.l.b16 %v690
      %v755 = vunpack.c.l.b16 %v691
      %v756 = vunpack.c.l.b16 %v692
      %v757 = vunpack.c.l.b16 %v693
      %v758 = vunpack.c.l.b16 %v694
      %v759 = vunpack.c.l.b16 %v695
      %v760 = vunpack.c.l.b16 %v696
      %v761 = vunpack.c.l.b16 %v697
      %v762 = vunpack.c.l.b16 %v698
      %v763 = vunpack.c.l.b16 %v699
      %v764 = vunpack.c.l.b16 %v700
      %v765 = vunpack.c.l.b16 %v701
      %v766 = vunpack.c.l.b16 %v702
      %v767 = vunpack.c.l.b16 %v703
      %v768 = vunpack.c.l.b16 %v704
      %v769 = vunpack.c.l.b16 %v705
      %v770 = vunpack.c.l.b16 %v706
      %v771 = vunpack.c.l.b16 %v707
      %v772 = vunpack.c.l.b16 %v708
      %v773 = vunpack.c.l.b16 %v709
      %v774 = vunpack.c.l.b16 %v710
      %v775 = vunpack.c.l.b16 %v711
      %v776 = vunpack.c.l.b16 %v712
      %v777 = vunpack.c.l.b16 %v713
      %v778 = vunpack.c.l.b16 %v714
      %v779 = vunpack.c.l.b16 %v715
      %v780 = vpack.c.b16 %v749, %v748
      %v781 = vpack.c.b16 %v751, %v750
      %v782 = vpack.c.b16 %v753, %v752
      %v783 = vpack.c.b16 %v755, %v754
      %v784 = vpack.c.b16 %v757, %v756
      %v785 = vpack.c.b16 %v759, %v758
      %v786 = vpack.c.b16 %v761, %v760
      %v787 = vpack.c.b16 %v763, %v762
      %v788 = vpack.c.b16 %v765, %v764
      %v789 = vpack.c.b16 %v767, %v766
      %v790 = vpack.c.b16 %v769, %v768
      %v791 = vpack.c.b16 %v771, %v770
      %v792 = vpack.c.b16 %v773, %v772
      %v793 = vpack.c.b16 %v775, %v774
      %v794 = vpack.c.b16 %v777, %v776
      %v795 = vpack.c.b16 %v779, %v778
      %796 = vrot.lane.b32.xlu0 %v780, 124
      %v797 = vpop.permute.xlu0 %796
      %798 = vrot.lane.b32.xlu0 %v781, 124
      %v799 = vpop.permute.xlu0 %798
      %800 = vrot.lane.b32.xlu0 %v782, 124
      %v801 = vpop.permute.xlu0 %800
      %802 = vrot.lane.b32.xlu0 %v783, 124
      %v803 = vpop.permute.xlu0 %802
      %804 = vrot.lane.b32.xlu0 %v784, 124
      %v805 = vpop.permute.xlu0 %804
      %806 = vrot.lane.b32.xlu0 %v785, 124
      %v807 = vpop.permute.xlu0 %806
      %808 = vrot.lane.b32.xlu0 %v786, 124
      %v809 = vpop.permute.xlu0 %808
      %810 = vrot.lane.b32.xlu0 %v787, 124
      %v811 = vpop.permute.xlu0 %810
      %812 = vrot.lane.b32.xlu0 %v788, 124
      %v813 = vpop.permute.xlu0 %812
      %814 = vrot.lane.b32.xlu0 %v789, 124
      %v815 = vpop.permute.xlu0 %814
      %816 = vrot.lane.b32.xlu0 %v790, 124
      %v817 = vpop.permute.xlu0 %816
      %818 = vrot.lane.b32.xlu0 %v791, 124
      %v819 = vpop.permute.xlu0 %818
      %820 = vrot.lane.b32.xlu0 %v792, 124
      %v821 = vpop.permute.xlu0 %820
      %822 = vrot.lane.b32.xlu0 %v793, 124
      %v823 = vpop.permute.xlu0 %822
      %824 = vrot.lane.b32.xlu0 %v794, 124
      %v825 = vpop.permute.xlu0 %824
      %826 = vrot.lane.b32.xlu0 %v795, 124
      %v827 = vpop.permute.xlu0 %826
      %vm828 = vcmask 31744
      %v830 = vsel %vm828, %v780, 0
      %v833 = vsel %vm828, %v781, 0
      %v836 = vsel %vm828, %v782, 0
      %v839 = vsel %vm828, %v783, 0
      %v842 = vsel %vm828, %v784, 0
      %v845 = vsel %vm828, %v785, 0
      %v848 = vsel %vm828, %v786, 0
      %v851 = vsel %vm828, %v787, 0
      %v854 = vsel %vm828, %v788, 0
      %v857 = vsel %vm828, %v789, 0
      %v860 = vsel %vm828, %v790, 0
      %v863 = vsel %vm828, %v791, 0
      %v866 = vsel %vm828, %v792, 0
      %v869 = vsel %vm828, %v793, 0
      %v872 = vsel %vm828, %v794, 0
      %v875 = vsel %vm828, %v795, 0
      %v878 = vsel %vm828, %v797, 0
      %v881 = vsel %vm828, %v799, 0
      %v884 = vsel %vm828, %v801, 0
      %v887 = vsel %vm828, %v803, 0
      %v890 = vsel %vm828, %v805, 0
      %v893 = vsel %vm828, %v807, 0
      %v896 = vsel %vm828, %v809, 0
      %v899 = vsel %vm828, %v811, 0
      %v902 = vsel %vm828, %v813, 0
      %v905 = vsel %vm828, %v815, 0
      %v908 = vsel %vm828, %v817, 0
      %v911 = vsel %vm828, %v819, 0
      %v914 = vsel %vm828, %v821, 0
      %v917 = vsel %vm828, %v823, 0
      %v920 = vsel %vm828, %v825, 0
      %v923 = vsel %vm828, %v827, 0
      %925 = vmatprep.subr.bf16.mxu0 0
      %926 = vmatpush1.bf16.xpose.msra.mxu0 %v899
      %927 = vmatprep.subr.bf16.mxu0 0
      %928 = vmatpush1.bf16.xpose.msra.mxu0 %v896
      %929 = vmatprep.subr.bf16.mxu0 0
      %930 = vmatpush1.bf16.xpose.msra.mxu0 %v893
      %931 = vmatprep.subr.bf16.mxu0 0
      %932 = vmatpush1.bf16.xpose.msra.mxu0 %v890
      %933 = vmatprep.subr.bf16.mxu0 0
      %934 = vmatpush1.bf16.xpose.msra.mxu0 %v887
      %935 = vmatprep.subr.bf16.mxu0 0
      %936 = vmatpush1.bf16.xpose.msra.mxu0 %v884
      %937 = vmatprep.subr.bf16.mxu0 0
      %938 = vmatpush1.bf16.xpose.msra.mxu0 %v881
      %939 = vmatprep.subr.bf16.mxu0 0
      %940 = vmatpush1.bf16.xpose.msra.mxu0 %v878
      %941 = vmatprep.subr.bf16.mxu0 0
      %942 = vmatpush2.bf16.xpose.msra.mxu0 %v923
      %943 = vmatprep.subr.bf16.mxu0 0
      %944 = vmatpush2.bf16.xpose.msra.mxu0 %v920
      %945 = vmatprep.subr.bf16.mxu0 0
      %946 = vmatpush2.bf16.xpose.msra.mxu0 %v917
      %947 = vmatprep.subr.bf16.mxu0 0
      %948 = vmatpush2.bf16.xpose.msra.mxu0 %v914
      %949 = vmatprep.subr.bf16.mxu0 0
      %950 = vmatpush2.bf16.xpose.msra.mxu0 %v911
      %951 = vmatprep.subr.bf16.mxu0 0
      %952 = vmatpush2.bf16.xpose.msra.mxu0 %v908
      %953 = vmatprep.subr.bf16.mxu0 0
      %954 = vmatpush2.bf16.xpose.msra.mxu0 %v905
      %955 = vmatprep.subr.bf16.mxu0 0
      %956 = vmatpush2.bf16.xpose.msra.mxu0 %v902
      %957 = vmatprep.mubr.bf16.mxu0 0
      %958 = vmatmul.mubr.bf16.gmra.mxu0 %v830
      %v959 = vpop.f32.mrf.mxu0
      %v960 = vadd.f32 0.0, %v959
      %v961 = vpop.f32.mrf.mxu0
      %v962 = vadd.f32 0.0, %v961
      %v963 = vpop.f32.mrf.mxu0
      %v964 = vadd.f32 0.0, %v963
      %v965 = vpop.f32.mrf.mxu0
      %v966 = vadd.f32 0.0, %v965
      %967 = vmatprep.mubr.bf16.mxu0 0
      %968 = vmatmul.mubr.bf16.gmra.mxu0 %v833
      %v969 = vpop.f32.mrf.mxu0
      %v970 = vadd.f32 0.0, %v969
      %v971 = vpop.f32.mrf.mxu0
      %v972 = vadd.f32 0.0, %v971
      %v973 = vpop.f32.mrf.mxu0
      %v974 = vadd.f32 0.0, %v973
      %v975 = vpop.f32.mrf.mxu0
      %v976 = vadd.f32 0.0, %v975
      %977 = vmatprep.mubr.bf16.mxu0 0
      %978 = vmatmul.mubr.bf16.gmra.mxu0 %v836
      %v979 = vpop.f32.mrf.mxu0
      %v980 = vadd.f32 0.0, %v979
      %v981 = vpop.f32.mrf.mxu0
      %v982 = vadd.f32 0.0, %v981
      %v983 = vpop.f32.mrf.mxu0
      %v984 = vadd.f32 0.0, %v983
      %v985 = vpop.f32.mrf.mxu0
      %v986 = vadd.f32 0.0, %v985
      %987 = vmatprep.mubr.bf16.mxu0 0
      %988 = vmatmul.mubr.bf16.gmra.mxu0 %v839
      %v989 = vpop.f32.mrf.mxu0
      %v990 = vadd.f32 0.0, %v989
      %v991 = vpop.f32.mrf.mxu0
      %v992 = vadd.f32 0.0, %v991
      %v993 = vpop.f32.mrf.mxu0
      %v994 = vadd.f32 0.0, %v993
      %v995 = vpop.f32.mrf.mxu0
      %v996 = vadd.f32 0.0, %v995
      %997 = vmatprep.mubr.bf16.mxu0 0
      %998 = vmatmul.mubr.bf16.gmra.mxu0 %v842
      %v999 = vpop.f32.mrf.mxu0
      %v1000 = vadd.f32 0.0, %v999
      %v1001 = vpop.f32.mrf.mxu0
      %v1002 = vadd.f32 0.0, %v1001
      %v1003 = vpop.f32.mrf.mxu0
      %v1004 = vadd.f32 0.0, %v1003
      %v1005 = vpop.f32.mrf.mxu0
      %v1006 = vadd.f32 0.0, %v1005
      %1007 = vmatprep.mubr.bf16.mxu0 0
      %1008 = vmatmul.mubr.bf16.gmra.mxu0 %v845
      %v1009 = vpop.f32.mrf.mxu0
      %v1010 = vadd.f32 0.0, %v1009
      %v1011 = vpop.f32.mrf.mxu0
      %v1012 = vadd.f32 0.0, %v1011
      %v1013 = vpop.f32.mrf.mxu0
      %v1014 = vadd.f32 0.0, %v1013
      %v1015 = vpop.f32.mrf.mxu0
      %v1016 = vadd.f32 0.0, %v1015
      %1017 = vmatprep.mubr.bf16.mxu0 0
      %1018 = vmatmul.mubr.bf16.gmra.mxu0 %v848
      %v1019 = vpop.f32.mrf.mxu0
      %v1020 = vadd.f32 0.0, %v1019
      %v1021 = vpop.f32.mrf.mxu0
      %v1022 = vadd.f32 0.0, %v1021
      %v1023 = vpop.f32.mrf.mxu0
      %v1024 = vadd.f32 0.0, %v1023
      %v1025 = vpop.f32.mrf.mxu0
      %v1026 = vadd.f32 0.0, %v1025
      %1027 = vmatprep.mubr.bf16.mxu0 0
      %1028 = vmatmul.mubr.bf16.gmra.mxu0 %v851
      %v1029 = vpop.f32.mrf.mxu0
      %v1030 = vadd.f32 0.0, %v1029
      %v1031 = vpop.f32.mrf.mxu0
      %v1032 = vadd.f32 0.0, %v1031
      %v1033 = vpop.f32.mrf.mxu0
      %v1034 = vadd.f32 0.0, %v1033
      %v1035 = vpop.f32.mrf.mxu0
      %v1036 = vadd.f32 0.0, %v1035
      %1037 = vmatprep.mubr.bf16.mxu0 0
      %1038 = vmatmul.mubr.bf16.gmra.mxu0 %v854
      %v1039 = vpop.f32.mrf.mxu0
      %v1040 = vadd.f32 0.0, %v1039
      %v1041 = vpop.f32.mrf.mxu0
      %v1042 = vadd.f32 0.0, %v1041
      %v1043 = vpop.f32.mrf.mxu0
      %v1044 = vadd.f32 0.0, %v1043
      %v1045 = vpop.f32.mrf.mxu0
      %v1046 = vadd.f32 0.0, %v1045
      %1047 = vmatprep.mubr.bf16.mxu0 0
      %1048 = vmatmul.mubr.bf16.gmra.mxu0 %v857
      %v1049 = vpop.f32.mrf.mxu0
      %v1050 = vadd.f32 0.0, %v1049
      %v1051 = vpop.f32.mrf.mxu0
      %v1052 = vadd.f32 0.0, %v1051
      %v1053 = vpop.f32.mrf.mxu0
      %v1054 = vadd.f32 0.0, %v1053
      %v1055 = vpop.f32.mrf.mxu0
      %v1056 = vadd.f32 0.0, %v1055
      %1057 = vmatprep.mubr.bf16.mxu0 0
      %1058 = vmatmul.mubr.bf16.gmra.mxu0 %v860
      %v1059 = vpop.f32.mrf.mxu0
      %v1060 = vadd.f32 0.0, %v1059
      %v1061 = vpop.f32.mrf.mxu0
      %v1062 = vadd.f32 0.0, %v1061
      %v1063 = vpop.f32.mrf.mxu0
      %v1064 = vadd.f32 0.0, %v1063
      %v1065 = vpop.f32.mrf.mxu0
      %v1066 = vadd.f32 0.0, %v1065
      %1067 = vmatprep.mubr.bf16.mxu0 0
      %1068 = vmatmul.mubr.bf16.gmra.mxu0 %v863
      %v1069 = vpop.f32.mrf.mxu0
      %v1070 = vadd.f32 0.0, %v1069
      %v1071 = vpop.f32.mrf.mxu0
      %v1072 = vadd.f32 0.0, %v1071
      %v1073 = vpop.f32.mrf.mxu0
      %v1074 = vadd.f32 0.0, %v1073
      %v1075 = vpop.f32.mrf.mxu0
      %v1076 = vadd.f32 0.0, %v1075
      %1077 = vmatprep.mubr.bf16.mxu0 0
      %1078 = vmatmul.mubr.bf16.gmra.mxu0 %v866
      %v1079 = vpop.f32.mrf.mxu0
      %v1080 = vadd.f32 0.0, %v1079
      %v1081 = vpop.f32.mrf.mxu0
      %v1082 = vadd.f32 0.0, %v1081
      %v1083 = vpop.f32.mrf.mxu0
      %v1084 = vadd.f32 0.0, %v1083
      %v1085 = vpop.f32.mrf.mxu0
      %v1086 = vadd.f32 0.0, %v1085
      %1087 = vmatprep.mubr.bf16.mxu0 0
      %1088 = vmatmul.mubr.bf16.gmra.mxu0 %v869
      %v1089 = vpop.f32.mrf.mxu0
      %v1090 = vadd.f32 0.0, %v1089
      %v1091 = vpop.f32.mrf.mxu0
      %v1092 = vadd.f32 0.0, %v1091
      %v1093 = vpop.f32.mrf.mxu0
      %v1094 = vadd.f32 0.0, %v1093
      %v1095 = vpop.f32.mrf.mxu0
      %v1096 = vadd.f32 0.0, %v1095
      %1097 = vmatprep.mubr.bf16.mxu0 0
      %1098 = vmatmul.mubr.bf16.gmra.mxu0 %v872
      %v1099 = vpop.f32.mrf.mxu0
      %v1100 = vadd.f32 0.0, %v1099
      %v1101 = vpop.f32.mrf.mxu0
      %v1102 = vadd.f32 0.0, %v1101
      %v1103 = vpop.f32.mrf.mxu0
      %v1104 = vadd.f32 0.0, %v1103
      %v1105 = vpop.f32.mrf.mxu0
      %v1106 = vadd.f32 0.0, %v1105
      %1107 = vmatprep.mubr.bf16.mxu0 0
      %1108 = vmatmul.mubr.bf16.gmra.mxu0 %v875
      %v1109 = vpop.f32.mrf.mxu0
      %v1110 = vadd.f32 0.0, %v1109
      %v1111 = vpop.f32.mrf.mxu0
      %v1112 = vadd.f32 0.0, %v1111
      %v1113 = vpop.f32.mrf.mxu0
      %v1114 = vadd.f32 0.0, %v1113
      %v1115 = vpop.f32.mrf.mxu0
      %v1116 = vadd.f32 0.0, %v1115
      %1117 = vdwg.mxu0
      %v1118 = vmax.f32 %v960, %v962
      %1119 = vmax.xlane.f32.xlu0 %v1118
      %v1120 = vpop.xlane.xlu0 %1119
      %v1121 = vmax.f32 %v964, %v966
      %1122 = vmax.xlane.f32.xlu0 %v1121
      %v1123 = vpop.xlane.xlu0 %1122
      %v1124 = vmax.f32 %v970, %v972
      %1125 = vmax.xlane.f32.xlu0 %v1124
      %v1126 = vpop.xlane.xlu0 %1125
      %v1127 = vmax.f32 %v974, %v976
      %1128 = vmax.xlane.f32.xlu0 %v1127
      %v1129 = vpop.xlane.xlu0 %1128
      %v1130 = vmax.f32 %v980, %v982
      %1131 = vmax.xlane.f32.xlu0 %v1130
      %v1132 = vpop.xlane.xlu0 %1131
      %v1133 = vmax.f32 %v984, %v986
      %1134 = vmax.xlane.f32.xlu0 %v1133
      %v1135 = vpop.xlane.xlu0 %1134
      %v1136 = vmax.f32 %v990, %v992
      %1137 = vmax.xlane.f32.xlu0 %v1136
      %v1138 = vpop.xlane.xlu0 %1137
      %v1139 = vmax.f32 %v994, %v996
      %1140 = vmax.xlane.f32.xlu0 %v1139
      %v1141 = vpop.xlane.xlu0 %1140
      %v1142 = vmax.f32 %v1000, %v1002
      %1143 = vmax.xlane.f32.xlu0 %v1142
      %v1144 = vpop.xlane.xlu0 %1143
      %v1145 = vmax.f32 %v1004, %v1006
      %1146 = vmax.xlane.f32.xlu0 %v1145
      %v1147 = vpop.xlane.xlu0 %1146
      %v1148 = vmax.f32 %v1010, %v1012
      %1149 = vmax.xlane.f32.xlu0 %v1148
      %v1150 = vpop.xlane.xlu0 %1149
      %v1151 = vmax.f32 %v1014, %v1016
      %1152 = vmax.xlane.f32.xlu0 %v1151
      %v1153 = vpop.xlane.xlu0 %1152
      %v1154 = vmax.f32 %v1020, %v1022
      %1155 = vmax.xlane.f32.xlu0 %v1154
      %v1156 = vpop.xlane.xlu0 %1155
      %v1157 = vmax.f32 %v1024, %v1026
      %1158 = vmax.xlane.f32.xlu0 %v1157
      %v1159 = vpop.xlane.xlu0 %1158
      %v1160 = vmax.f32 %v1030, %v1032
      %1161 = vmax.xlane.f32.xlu0 %v1160
      %v1162 = vpop.xlane.xlu0 %1161
      %v1163 = vmax.f32 %v1034, %v1036
      %1164 = vmax.xlane.f32.xlu0 %v1163
      %v1165 = vpop.xlane.xlu0 %1164
      %v1166 = vmax.f32 %v1040, %v1042
      %1167 = vmax.xlane.f32.xlu0 %v1166
      %v1168 = vpop.xlane.xlu0 %1167
      %v1169 = vmax.f32 %v1044, %v1046
      %1170 = vmax.xlane.f32.xlu0 %v1169
      %v1171 = vpop.xlane.xlu0 %1170
      %v1172 = vmax.f32 %v1050, %v1052
      %1173 = vmax.xlane.f32.xlu0 %v1172
      %v1174 = vpop.xlane.xlu0 %1173
      %v1175 = vmax.f32 %v1054, %v1056
      %1176 = vmax.xlane.f32.xlu0 %v1175
      %v1177 = vpop.xlane.xlu0 %1176
      %v1178 = vmax.f32 %v1060, %v1062
      %1179 = vmax.xlane.f32.xlu0 %v1178
      %v1180 = vpop.xlane.xlu0 %1179
      %v1181 = vmax.f32 %v1064, %v1066
      %1182 = vmax.xlane.f32.xlu0 %v1181
      %v1183 = vpop.xlane.xlu0 %1182
      %v1184 = vmax.f32 %v1070, %v1072
      %1185 = vmax.xlane.f32.xlu0 %v1184
      %v1186 = vpop.xlane.xlu0 %1185
      %v1187 = vmax.f32 %v1074, %v1076
      %1188 = vmax.xlane.f32.xlu0 %v1187
      %v1189 = vpop.xlane.xlu0 %1188
      %v1190 = vmax.f32 %v1080, %v1082
      %1191 = vmax.xlane.f32.xlu0 %v1190
      %v1192 = vpop.xlane.xlu0 %1191
      %v1193 = vmax.f32 %v1084, %v1086
      %1194 = vmax.xlane.f32.xlu0 %v1193
      %v1195 = vpop.xlane.xlu0 %1194
      %v1196 = vmax.f32 %v1090, %v1092
      %1197 = vmax.xlane.f32.xlu0 %v1196
      %v1198 = vpop.xlane.xlu0 %1197
      %v1199 = vmax.f32 %v1094, %v1096
      %1200 = vmax.xlane.f32.xlu0 %v1199
      %v1201 = vpop.xlane.xlu0 %1200
      %v1202 = vmax.f32 %v1100, %v1102
      %1203 = vmax.xlane.f32.xlu0 %v1202
      %v1204 = vpop.xlane.xlu0 %1203
      %v1205 = vmax.f32 %v1104, %v1106
      %1206 = vmax.xlane.f32.xlu0 %v1205
      %v1207 = vpop.xlane.xlu0 %1206
      %v1208 = vmax.f32 %v1110, %v1112
      %1209 = vmax.xlane.f32.xlu0 %v1208
      %v1210 = vpop.xlane.xlu0 %1209
      %v1211 = vmax.f32 %v1114, %v1116
      %1212 = vmax.xlane.f32.xlu0 %v1211
      %v1213 = vpop.xlane.xlu0 %1212
      %v1214 = vsub.f32 %v960, %v1120
      %v1215 = vsub.f32 %v962, %v1120
      %v1216 = vsub.f32 %v964, %v1123
      %v1217 = vsub.f32 %v966, %v1123
      %v1218 = vsub.f32 %v970, %v1126
      %v1219 = vsub.f32 %v972, %v1126
      %v1220 = vsub.f32 %v974, %v1129
      %v1221 = vsub.f32 %v976, %v1129
      %v1222 = vsub.f32 %v980, %v1132
      %v1223 = vsub.f32 %v982, %v1132
      %v1224 = vsub.f32 %v984, %v1135
      %v1225 = vsub.f32 %v986, %v1135
      %v1226 = vsub.f32 %v990, %v1138
      %v1227 = vsub.f32 %v992, %v1138
      %v1228 = vsub.f32 %v994, %v1141
      %v1229 = vsub.f32 %v996, %v1141
      %v1230 = vsub.f32 %v1000, %v1144
      %v1231 = vsub.f32 %v1002, %v1144
      %v1232 = vsub.f32 %v1004, %v1147
      %v1233 = vsub.f32 %v1006, %v1147
      %v1234 = vsub.f32 %v1010, %v1150
      %v1235 = vsub.f32 %v1012, %v1150
      %v1236 = vsub.f32 %v1014, %v1153
      %v1237 = vsub.f32 %v1016, %v1153
      %v1238 = vsub.f32 %v1020, %v1156
      %v1239 = vsub.f32 %v1022, %v1156
      %v1240 = vsub.f32 %v1024, %v1159
      %v1241 = vsub.f32 %v1026, %v1159
      %v1242 = vsub.f32 %v1030, %v1162
      %v1243 = vsub.f32 %v1032, %v1162
      %v1244 = vsub.f32 %v1034, %v1165
      %v1245 = vsub.f32 %v1036, %v1165
      %v1246 = vsub.f32 %v1040, %v1168
      %v1247 = vsub.f32 %v1042, %v1168
      %v1248 = vsub.f32 %v1044, %v1171
      %v1249 = vsub.f32 %v1046, %v1171
      %v1250 = vsub.f32 %v1050, %v1174
      %v1251 = vsub.f32 %v1052, %v1174
      %v1252 = vsub.f32 %v1054, %v1177
      %v1253 = vsub.f32 %v1056, %v1177
      %v1254 = vsub.f32 %v1060, %v1180
      %v1255 = vsub.f32 %v1062, %v1180
      %v1256 = vsub.f32 %v1064, %v1183
      %v1257 = vsub.f32 %v1066, %v1183
      %v1258 = vsub.f32 %v1070, %v1186
      %v1259 = vsub.f32 %v1072, %v1186
      %v1260 = vsub.f32 %v1074, %v1189
      %v1261 = vsub.f32 %v1076, %v1189
      %v1262 = vsub.f32 %v1080, %v1192
      %v1263 = vsub.f32 %v1082, %v1192
      %v1264 = vsub.f32 %v1084, %v1195
      %v1265 = vsub.f32 %v1086, %v1195
      %v1266 = vsub.f32 %v1090, %v1198
      %v1267 = vsub.f32 %v1092, %v1198
      %v1268 = vsub.f32 %v1094, %v1201
      %v1269 = vsub.f32 %v1096, %v1201
      %v1270 = vsub.f32 %v1100, %v1204
      %v1271 = vsub.f32 %v1102, %v1204
      %v1272 = vsub.f32 %v1104, %v1207
      %v1273 = vsub.f32 %v1106, %v1207
      %v1274 = vsub.f32 %v1110, %v1210
      %v1275 = vsub.f32 %v1112, %v1210
      %v1276 = vsub.f32 %v1114, %v1213
      %v1277 = vsub.f32 %v1116, %v1213
      %v1278 = vmul.f32 %v1214, 1.442695
      %v1279 = vpow.pop %v1278
      %v1280 = vmul.f32 %v1215, 1.442695
      %v1281 = vpow.pop %v1280
      %v1282 = vmul.f32 %v1216, 1.442695
      %v1283 = vpow.pop %v1282
      %v1284 = vmul.f32 %v1217, 1.442695
      %v1285 = vpow.pop %v1284
      %v1286 = vmul.f32 %v1218, 1.442695
      %v1287 = vpow.pop %v1286
      %v1288 = vmul.f32 %v1219, 1.442695
      %v1289 = vpow.pop %v1288
      %v1290 = vmul.f32 %v1220, 1.442695
      %v1291 = vpow.pop %v1290
      %v1292 = vmul.f32 %v1221, 1.442695
      %v1293 = vpow.pop %v1292
      %v1294 = vmul.f32 %v1222, 1.442695
      %v1295 = vpow.pop %v1294
      %v1296 = vmul.f32 %v1223, 1.442695
      %v1297 = vpow.pop %v1296
      %v1298 = vmul.f32 %v1224, 1.442695
      %v1299 = vpow.pop %v1298
      %v1300 = vmul.f32 %v1225, 1.442695
      %v1301 = vpow.pop %v1300
      %v1302 = vmul.f32 %v1226, 1.442695
      %v1303 = vpow.pop %v1302
      %v1304 = vmul.f32 %v1227, 1.442695
      %v1305 = vpow.pop %v1304
      %v1306 = vmul.f32 %v1228, 1.442695
      %v1307 = vpow.pop %v1306
      %v1308 = vmul.f32 %v1229, 1.442695
      %v1309 = vpow.pop %v1308
      %v1310 = vmul.f32 %v1230, 1.442695
      %v1311 = vpow.pop %v1310
      %v1312 = vmul.f32 %v1231, 1.442695
      %v1313 = vpow.pop %v1312
      %v1314 = vmul.f32 %v1232, 1.442695
      %v1315 = vpow.pop %v1314
      %v1316 = vmul.f32 %v1233, 1.442695
      %v1317 = vpow.pop %v1316
      %v1318 = vmul.f32 %v1234, 1.442695
      %v1319 = vpow.pop %v1318
      %v1320 = vmul.f32 %v1235, 1.442695
      %v1321 = vpow.pop %v1320
      %v1322 = vmul.f32 %v1236, 1.442695
      %v1323 = vpow.pop %v1322
      %v1324 = vmul.f32 %v1237, 1.442695
      %v1325 = vpow.pop %v1324
      %v1326 = vmul.f32 %v1238, 1.442695
      %v1327 = vpow.pop %v1326
      %v1328 = vmul.f32 %v1239, 1.442695
      %v1329 = vpow.pop %v1328
      %v1330 = vmul.f32 %v1240, 1.442695
      %v1331 = vpow.pop %v1330
      %v1332 = vmul.f32 %v1241, 1.442695
      %v1333 = vpow.pop %v1332
      %v1334 = vmul.f32 %v1242, 1.442695
      %v1335 = vpow.pop %v1334
      %v1336 = vmul.f32 %v1243, 1.442695
      %v1337 = vpow.pop %v1336
      %v1338 = vmul.f32 %v1244, 1.442695
      %v1339 = vpow.pop %v1338
      %v1340 = vmul.f32 %v1245, 1.442695
      %v1341 = vpow.pop %v1340
      %v1342 = vmul.f32 %v1246, 1.442695
      %v1343 = vpow.pop %v1342
      %v1344 = vmul.f32 %v1247, 1.442695
      %v1345 = vpow.pop %v1344
      %v1346 = vmul.f32 %v1248, 1.442695
      %v1347 = vpow.pop %v1346
      %v1348 = vmul.f32 %v1249, 1.442695
      %v1349 = vpow.pop %v1348
      %v1350 = vmul.f32 %v1250, 1.442695
      %v1351 = vpow.pop %v1350
      %v1352 = vmul.f32 %v1251, 1.442695
      %v1353 = vpow.pop %v1352
      %v1354 = vmul.f32 %v1252, 1.442695
      %v1355 = vpow.pop %v1354
      %v1356 = vmul.f32 %v1253, 1.442695
      %v1357 = vpow.pop %v1356
      %v1358 = vmul.f32 %v1254, 1.442695
      %v1359 = vpow.pop %v1358
      %v1360 = vmul.f32 %v1255, 1.442695
      %v1361 = vpow.pop %v1360
      %v1362 = vmul.f32 %v1256, 1.442695
      %v1363 = vpow.pop %v1362
      %v1364 = vmul.f32 %v1257, 1.442695
      %v1365 = vpow.pop %v1364
      %v1366 = vmul.f32 %v1258, 1.442695
      %v1367 = vpow.pop %v1366
      %v1368 = vmul.f32 %v1259, 1.442695
      %v1369 = vpow.pop %v1368
      %v1370 = vmul.f32 %v1260, 1.442695
      %v1371 = vpow.pop %v1370
      %v1372 = vmul.f32 %v1261, 1.442695
      %v1373 = vpow.pop %v1372
      %v1374 = vmul.f32 %v1262, 1.442695
      %v1375 = vpow.pop %v1374
      %v1376 = vmul.f32 %v1263, 1.442695
      %v1377 = vpow.pop %v1376
      %v1378 = vmul.f32 %v1264, 1.442695
      %v1379 = vpow.pop %v1378
      %v1380 = vmul.f32 %v1265, 1.442695
      %v1381 = vpow.pop %v1380
      %v1382 = vmul.f32 %v1266, 1.442695
      %v1383 = vpow.pop %v1382
      %v1384 = vmul.f32 %v1267, 1.442695
      %v1385 = vpow.pop %v1384
      %v1386 = vmul.f32 %v1268, 1.442695
      %v1387 = vpow.pop %v1386
      %v1388 = vmul.f32 %v1269, 1.442695
      %v1389 = vpow.pop %v1388
      %v1390 = vmul.f32 %v1270, 1.442695
      %v1391 = vpow.pop %v1390
      %v1392 = vmul.f32 %v1271, 1.442695
      %v1393 = vpow.pop %v1392
      %v1394 = vmul.f32 %v1272, 1.442695
      %v1395 = vpow.pop %v1394
      %v1396 = vmul.f32 %v1273, 1.442695
      %v1397 = vpow.pop %v1396
      %v1398 = vmul.f32 %v1274, 1.442695
      %v1399 = vpow.pop %v1398
      %v1400 = vmul.f32 %v1275, 1.442695
      %v1401 = vpow.pop %v1400
      %v1402 = vmul.f32 %v1276, 1.442695
      %v1403 = vpow.pop %v1402
      %v1404 = vmul.f32 %v1277, 1.442695
      %v1405 = vpow.pop %v1404
      %v1406 = vadd.f32 %v1279, %v1281
      %1407 = vadd.xlane.f32.xlu0 %v1406
      %v1408 = vpop.xlane.xlu0 %1407
      %v1409 = vadd.f32 %v1283, %v1285
      %1410 = vadd.xlane.f32.xlu0 %v1409
      %v1411 = vpop.xlane.xlu0 %1410
      %v1412 = vadd.f32 %v1287, %v1289
      %1413 = vadd.xlane.f32.xlu0 %v1412
      %v1414 = vpop.xlane.xlu0 %1413
      %v1415 = vadd.f32 %v1291, %v1293
      %1416 = vadd.xlane.f32.xlu0 %v1415
      %v1417 = vpop.xlane.xlu0 %1416
      %v1418 = vadd.f32 %v1295, %v1297
      %1419 = vadd.xlane.f32.xlu0 %v1418
      %v1420 = vpop.xlane.xlu0 %1419
      %v1421 = vadd.f32 %v1299, %v1301
      %1422 = vadd.xlane.f32.xlu0 %v1421
      %v1423 = vpop.xlane.xlu0 %1422
      %v1424 = vadd.f32 %v1303, %v1305
      %1425 = vadd.xlane.f32.xlu0 %v1424
      %v1426 = vpop.xlane.xlu0 %1425
      %v1427 = vadd.f32 %v1307, %v1309
      %1428 = vadd.xlane.f32.xlu0 %v1427
      %v1429 = vpop.xlane.xlu0 %1428
      %v1430 = vadd.f32 %v1311, %v1313
      %1431 = vadd.xlane.f32.xlu0 %v1430
      %v1432 = vpop.xlane.xlu0 %1431
      %v1433 = vadd.f32 %v1315, %v1317
      %1434 = vadd.xlane.f32.xlu0 %v1433
      %v1435 = vpop.xlane.xlu0 %1434
      %v1436 = vadd.f32 %v1319, %v1321
      %1437 = vadd.xlane.f32.xlu0 %v1436
      %v1438 = vpop.xlane.xlu0 %1437
      %v1439 = vadd.f32 %v1323, %v1325
      %1440 = vadd.xlane.f32.xlu0 %v1439
      %v1441 = vpop.xlane.xlu0 %1440
      %v1442 = vadd.f32 %v1327, %v1329
      %1443 = vadd.xlane.f32.xlu0 %v1442
      %v1444 = vpop.xlane.xlu0 %1443
      %v1445 = vadd.f32 %v1331, %v1333
      %1446 = vadd.xlane.f32.xlu0 %v1445
      %v1447 = vpop.xlane.xlu0 %1446
      %v1448 = vadd.f32 %v1335, %v1337
      %1449 = vadd.xlane.f32.xlu0 %v1448
      %v1450 = vpop.xlane.xlu0 %1449
      %v1451 = vadd.f32 %v1339, %v1341
      %1452 = vadd.xlane.f32.xlu0 %v1451
      %v1453 = vpop.xlane.xlu0 %1452
      %v1454 = vadd.f32 %v1343, %v1345
      %1455 = vadd.xlane.f32.xlu0 %v1454
      %v1456 = vpop.xlane.xlu0 %1455
      %v1457 = vadd.f32 %v1347, %v1349
      %1458 = vadd.xlane.f32.xlu0 %v1457
      %v1459 = vpop.xlane.xlu0 %1458
      %v1460 = vadd.f32 %v1351, %v1353
      %1461 = vadd.xlane.f32.xlu0 %v1460
      %v1462 = vpop.xlane.xlu0 %1461
      %v1463 = vadd.f32 %v1355, %v1357
      %1464 = vadd.xlane.f32.xlu0 %v1463
      %v1465 = vpop.xlane.xlu0 %1464
      %v1466 = vadd.f32 %v1359, %v1361
      %1467 = vadd.xlane.f32.xlu0 %v1466
      %v1468 = vpop.xlane.xlu0 %1467
      %v1469 = vadd.f32 %v1363, %v1365
      %1470 = vadd.xlane.f32.xlu0 %v1469
      %v1471 = vpop.xlane.xlu0 %1470
      %v1472 = vadd.f32 %v1367, %v1369
      %1473 = vadd.xlane.f32.xlu0 %v1472
      %v1474 = vpop.xlane.xlu0 %1473
      %v1475 = vadd.f32 %v1371, %v1373
      %1476 = vadd.xlane.f32.xlu0 %v1475
      %v1477 = vpop.xlane.xlu0 %1476
      %v1478 = vadd.f32 %v1375, %v1377
      %1479 = vadd.xlane.f32.xlu0 %v1478
      %v1480 = vpop.xlane.xlu0 %1479
      %v1481 = vadd.f32 %v1379, %v1381
      %1482 = vadd.xlane.f32.xlu0 %v1481
      %v1483 = vpop.xlane.xlu0 %1482
      %v1484 = vadd.f32 %v1383, %v1385
      %1485 = vadd.xlane.f32.xlu0 %v1484
      %v1486 = vpop.xlane.xlu0 %1485
      %v1487 = vadd.f32 %v1387, %v1389
      %1488 = vadd.xlane.f32.xlu0 %v1487
      %v1489 = vpop.xlane.xlu0 %1488
      %v1490 = vadd.f32 %v1391, %v1393
      %1491 = vadd.xlane.f32.xlu0 %v1490
      %v1492 = vpop.xlane.xlu0 %1491
      %v1493 = vadd.f32 %v1395, %v1397
      %1494 = vadd.xlane.f32.xlu0 %v1493
      %v1495 = vpop.xlane.xlu0 %1494
      %v1496 = vadd.f32 %v1399, %v1401
      %1497 = vadd.xlane.f32.xlu0 %v1496
      %v1498 = vpop.xlane.xlu0 %1497
      %v1499 = vadd.f32 %v1403, %v1405
      %1500 = vadd.xlane.f32.xlu0 %v1499
      %v1501 = vpop.xlane.xlu0 %1500
      %v1502 = vpack.c.bf16 %v1283, %v1279
      %v1503 = vpack.c.bf16 %v1285, %v1281
      %v1504 = vpack.c.bf16 %v1291, %v1287
      %v1505 = vpack.c.bf16 %v1293, %v1289
      %v1506 = vpack.c.bf16 %v1299, %v1295
      %v1507 = vpack.c.bf16 %v1301, %v1297
      %v1508 = vpack.c.bf16 %v1307, %v1303
      %v1509 = vpack.c.bf16 %v1309, %v1305
      %v1510 = vpack.c.bf16 %v1315, %v1311
      %v1511 = vpack.c.bf16 %v1317, %v1313
      %v1512 = vpack.c.bf16 %v1323, %v1319
      %v1513 = vpack.c.bf16 %v1325, %v1321
      %v1514 = vpack.c.bf16 %v1331, %v1327
      %v1515 = vpack.c.bf16 %v1333, %v1329
      %v1516 = vpack.c.bf16 %v1339, %v1335
      %v1517 = vpack.c.bf16 %v1341, %v1337
      %v1518 = vpack.c.bf16 %v1347, %v1343
      %v1519 = vpack.c.bf16 %v1349, %v1345
      %v1520 = vpack.c.bf16 %v1355, %v1351
      %v1521 = vpack.c.bf16 %v1357, %v1353
      %v1522 = vpack.c.bf16 %v1363, %v1359
      %v1523 = vpack.c.bf16 %v1365, %v1361
      %v1524 = vpack.c.bf16 %v1371, %v1367
      %v1525 = vpack.c.bf16 %v1373, %v1369
      %v1526 = vpack.c.bf16 %v1379, %v1375
      %v1527 = vpack.c.bf16 %v1381, %v1377
      %v1528 = vpack.c.bf16 %v1387, %v1383
      %v1529 = vpack.c.bf16 %v1389, %v1385
      %v1530 = vpack.c.bf16 %v1395, %v1391
      %v1531 = vpack.c.bf16 %v1397, %v1393
      %v1532 = vpack.c.bf16 %v1403, %v1399
      %v1533 = vpack.c.bf16 %v1405, %v1401
      %1534 = vrot.lane.b32.xlu0 %v780, 120
      %v1535 = vpop.permute.xlu0 %1534
      %1536 = vrot.lane.b32.xlu0 %v781, 120
      %v1537 = vpop.permute.xlu0 %1536
      %1538 = vrot.lane.b32.xlu0 %v782, 120
      %v1539 = vpop.permute.xlu0 %1538
      %1540 = vrot.lane.b32.xlu0 %v783, 120
      %v1541 = vpop.permute.xlu0 %1540
      %1542 = vrot.lane.b32.xlu0 %v784, 120
      %v1543 = vpop.permute.xlu0 %1542
      %1544 = vrot.lane.b32.xlu0 %v785, 120
      %v1545 = vpop.permute.xlu0 %1544
      %1546 = vrot.lane.b32.xlu0 %v786, 120
      %v1547 = vpop.permute.xlu0 %1546
      %1548 = vrot.lane.b32.xlu0 %v787, 120
      %v1549 = vpop.permute.xlu0 %1548
      %1550 = vrot.lane.b32.xlu0 %v788, 120
      %v1551 = vpop.permute.xlu0 %1550
      %1552 = vrot.lane.b32.xlu0 %v789, 120
      %v1553 = vpop.permute.xlu0 %1552
      %1554 = vrot.lane.b32.xlu0 %v790, 120
      %v1555 = vpop.permute.xlu0 %1554
      %1556 = vrot.lane.b32.xlu0 %v791, 120
      %v1557 = vpop.permute.xlu0 %1556
      %1558 = vrot.lane.b32.xlu0 %v792, 120
      %v1559 = vpop.permute.xlu0 %1558
      %1560 = vrot.lane.b32.xlu0 %v793, 120
      %v1561 = vpop.permute.xlu0 %1560
      %1562 = vrot.lane.b32.xlu0 %v794, 120
      %v1563 = vpop.permute.xlu0 %1562
      %1564 = vrot.lane.b32.xlu0 %v795, 120
      %v1565 = vpop.permute.xlu0 %1564
      %1582 = vmatprep.subr.bf16.mxu0 0
      %1583 = vmatpush1.bf16.msra.mxu0 %v1549
      %1584 = vmatprep.subr.bf16.mxu0 0
      %1585 = vmatpush1.bf16.msra.mxu0 %v1547
      %1586 = vmatprep.subr.bf16.mxu0 0
      %1587 = vmatpush1.bf16.msra.mxu0 %v1545
      %1588 = vmatprep.subr.bf16.mxu0 0
      %1589 = vmatpush1.bf16.msra.mxu0 %v1543
      %1590 = vmatprep.subr.bf16.mxu0 0
      %1591 = vmatpush1.bf16.msra.mxu0 %v1541
      %1592 = vmatprep.subr.bf16.mxu0 0
      %1593 = vmatpush1.bf16.msra.mxu0 %v1539
      %1594 = vmatprep.subr.bf16.mxu0 0
      %1595 = vmatpush1.bf16.msra.mxu0 %v1537
      %1596 = vmatprep.subr.bf16.mxu0 0
      %1597 = vmatpush1.bf16.msra.mxu0 %v1535
      %1598 = vmatprep.subr.bf16.mxu0 0
      %1599 = vmatpush2.bf16.msra.mxu0 %v1565
      %1600 = vmatprep.subr.bf16.mxu0 0
      %1601 = vmatpush2.bf16.msra.mxu0 %v1563
      %1602 = vmatprep.subr.bf16.mxu0 0
      %1603 = vmatpush2.bf16.msra.mxu0 %v1561
      %1604 = vmatprep.subr.bf16.mxu0 0
      %1605 = vmatpush2.bf16.msra.mxu0 %v1559
      %1606 = vmatprep.subr.bf16.mxu0 0
      %1607 = vmatpush2.bf16.msra.mxu0 %v1557
      %1608 = vmatprep.subr.bf16.mxu0 0
      %1609 = vmatpush2.bf16.msra.mxu0 %v1555
      %1610 = vmatprep.subr.bf16.mxu0 0
      %1611 = vmatpush2.bf16.msra.mxu0 %v1553
      %1612 = vmatprep.subr.bf16.mxu0 0
      %1613 = vmatpush2.bf16.msra.mxu0 %v1551
      %1614 = vmatprep.mubr.bf16.mxu0 %v1503
      %1615 = vmatmul.mubr.bf16.gmra.mxu0 %v1502
      %v1616 = vpop.f32.mrf.mxu0
      %v1617 = vadd.f32 0.0, %v1616
      %v1618 = vpop.f32.mrf.mxu0
      %v1619 = vpop.f32.mrf.mxu0
      %v1620 = vadd.f32 0.0, %v1619
      %v1621 = vpop.f32.mrf.mxu0
      %1622 = vmatprep.mubr.bf16.mxu0 %v1505
      %1623 = vmatmul.mubr.bf16.gmra.mxu0 %v1504
      %v1624 = vpop.f32.mrf.mxu0
      %v1625 = vadd.f32 0.0, %v1624
      %v1626 = vpop.f32.mrf.mxu0
      %v1627 = vpop.f32.mrf.mxu0
      %v1628 = vadd.f32 0.0, %v1627
      %v1629 = vpop.f32.mrf.mxu0
      %1630 = vmatprep.mubr.bf16.mxu0 %v1507
      %1631 = vmatmul.mubr.bf16.gmra.mxu0 %v1506
      %v1632 = vpop.f32.mrf.mxu0
      %v1633 = vadd.f32 0.0, %v1632
      %v1634 = vpop.f32.mrf.mxu0
      %v1635 = vpop.f32.mrf.mxu0
      %v1636 = vadd.f32 0.0, %v1635
      %v1637 = vpop.f32.mrf.mxu0
      %1638 = vmatprep.mubr.bf16.mxu0 %v1509
      %1639 = vmatmul.mubr.bf16.gmra.mxu0 %v1508
      %v1640 = vpop.f32.mrf.mxu0
      %v1641 = vadd.f32 0.0, %v1640
      %v1642 = vpop.f32.mrf.mxu0
      %v1643 = vpop.f32.mrf.mxu0
      %v1644 = vadd.f32 0.0, %v1643
      %v1645 = vpop.f32.mrf.mxu0
      %1646 = vmatprep.mubr.bf16.mxu0 %v1511
      %1647 = vmatmul.mubr.bf16.gmra.mxu0 %v1510
      %v1648 = vpop.f32.mrf.mxu0
      %v1649 = vadd.f32 0.0, %v1648
      %v1650 = vpop.f32.mrf.mxu0
      %v1651 = vpop.f32.mrf.mxu0
      %v1652 = vadd.f32 0.0, %v1651
      %v1653 = vpop.f32.mrf.mxu0
      %1654 = vmatprep.mubr.bf16.mxu0 %v1513
      %1655 = vmatmul.mubr.bf16.gmra.mxu0 %v1512
      %v1656 = vpop.f32.mrf.mxu0
      %v1657 = vadd.f32 0.0, %v1656
      %v1658 = vpop.f32.mrf.mxu0
      %v1659 = vpop.f32.mrf.mxu0
      %v1660 = vadd.f32 0.0, %v1659
      %v1661 = vpop.f32.mrf.mxu0
      %1662 = vmatprep.mubr.bf16.mxu0 %v1515
      %1663 = vmatmul.mubr.bf16.gmra.mxu0 %v1514
      %v1664 = vpop.f32.mrf.mxu0
      %v1665 = vadd.f32 0.0, %v1664
      %v1666 = vpop.f32.mrf.mxu0
      %v1667 = vpop.f32.mrf.mxu0
      %v1668 = vadd.f32 0.0, %v1667
      %v1669 = vpop.f32.mrf.mxu0
      %1670 = vmatprep.mubr.bf16.mxu0 %v1517
      %1671 = vmatmul.mubr.bf16.gmra.mxu0 %v1516
      %v1672 = vpop.f32.mrf.mxu0
      %v1673 = vadd.f32 0.0, %v1672
      %v1674 = vpop.f32.mrf.mxu0
      %v1675 = vpop.f32.mrf.mxu0
      %v1676 = vadd.f32 0.0, %v1675
      %v1677 = vpop.f32.mrf.mxu0
      %1678 = vmatprep.mubr.bf16.mxu0 %v1519
      %1679 = vmatmul.mubr.bf16.gmra.mxu0 %v1518
      %v1680 = vpop.f32.mrf.mxu0
      %v1681 = vadd.f32 0.0, %v1680
      %v1682 = vpop.f32.mrf.mxu0
      %v1683 = vpop.f32.mrf.mxu0
      %v1684 = vadd.f32 0.0, %v1683
      %v1685 = vpop.f32.mrf.mxu0
      %1686 = vmatprep.mubr.bf16.mxu0 %v1521
      %1687 = vmatmul.mubr.bf16.gmra.mxu0 %v1520
      %v1688 = vpop.f32.mrf.mxu0
      %v1689 = vadd.f32 0.0, %v1688
      %v1690 = vpop.f32.mrf.mxu0
      %v1691 = vpop.f32.mrf.mxu0
      %v1692 = vadd.f32 0.0, %v1691
      %v1693 = vpop.f32.mrf.mxu0
      %1694 = vmatprep.mubr.bf16.mxu0 %v1523
      %1695 = vmatmul.mubr.bf16.gmra.mxu0 %v1522
      %v1696 = vpop.f32.mrf.mxu0
      %v1697 = vadd.f32 0.0, %v1696
      %v1698 = vpop.f32.mrf.mxu0
      %v1699 = vpop.f32.mrf.mxu0
      %v1700 = vadd.f32 0.0, %v1699
      %v1701 = vpop.f32.mrf.mxu0
      %1702 = vmatprep.mubr.bf16.mxu0 %v1525
      %1703 = vmatmul.mubr.bf16.gmra.mxu0 %v1524
      %v1704 = vpop.f32.mrf.mxu0
      %v1705 = vadd.f32 0.0, %v1704
      %v1706 = vpop.f32.mrf.mxu0
      %v1707 = vpop.f32.mrf.mxu0
      %v1708 = vadd.f32 0.0, %v1707
      %v1709 = vpop.f32.mrf.mxu0
      %1710 = vmatprep.mubr.bf16.mxu0 %v1527
      %1711 = vmatmul.mubr.bf16.gmra.mxu0 %v1526
      %v1712 = vpop.f32.mrf.mxu0
      %v1713 = vadd.f32 0.0, %v1712
      %v1714 = vpop.f32.mrf.mxu0
      %v1715 = vpop.f32.mrf.mxu0
      %v1716 = vadd.f32 0.0, %v1715
      %v1717 = vpop.f32.mrf.mxu0
      %1718 = vmatprep.mubr.bf16.mxu0 %v1529
      %1719 = vmatmul.mubr.bf16.gmra.mxu0 %v1528
      %v1720 = vpop.f32.mrf.mxu0
      %v1721 = vadd.f32 0.0, %v1720
      %v1722 = vpop.f32.mrf.mxu0
      %v1723 = vpop.f32.mrf.mxu0
      %v1724 = vadd.f32 0.0, %v1723
      %v1725 = vpop.f32.mrf.mxu0
      %1726 = vmatprep.mubr.bf16.mxu0 %v1531
      %1727 = vmatmul.mubr.bf16.gmra.mxu0 %v1530
      %v1728 = vpop.f32.mrf.mxu0
      %v1729 = vadd.f32 0.0, %v1728
      %v1730 = vpop.f32.mrf.mxu0
      %v1731 = vpop.f32.mrf.mxu0
      %v1732 = vadd.f32 0.0, %v1731
      %v1733 = vpop.f32.mrf.mxu0
      %1734 = vmatprep.mubr.bf16.mxu0 %v1533
      %1735 = vmatmul.mubr.bf16.gmra.mxu0 %v1532
      %v1736 = vpop.f32.mrf.mxu0
      %v1737 = vadd.f32 0.0, %v1736
      %v1738 = vpop.f32.mrf.mxu0
      %v1739 = vpop.f32.mrf.mxu0
      %v1740 = vadd.f32 0.0, %v1739
      %v1741 = vpop.f32.mrf.mxu0
      %1742 = vdwg.mxu0
      %v1743 = vrcp.pop %v1408
      %v1744 = vrcp.pop %v1411
      %v1745 = vrcp.pop %v1414
      %v1746 = vrcp.pop %v1417
      %v1747 = vrcp.pop %v1420
      %v1748 = vrcp.pop %v1423
      %v1749 = vrcp.pop %v1426
      %v1750 = vrcp.pop %v1429
      %v1751 = vrcp.pop %v1432
      %v1752 = vrcp.pop %v1435
      %v1753 = vrcp.pop %v1438
      %v1754 = vrcp.pop %v1441
      %v1755 = vrcp.pop %v1444
      %v1756 = vrcp.pop %v1447
      %v1757 = vrcp.pop %v1450
      %v1758 = vrcp.pop %v1453
      %v1759 = vrcp.pop %v1456
      %v1760 = vrcp.pop %v1459
      %v1761 = vrcp.pop %v1462
      %v1762 = vrcp.pop %v1465
      %v1763 = vrcp.pop %v1468
      %v1764 = vrcp.pop %v1471
      %v1765 = vrcp.pop %v1474
      %v1766 = vrcp.pop %v1477
      %v1767 = vrcp.pop %v1480
      %v1768 = vrcp.pop %v1483
      %v1769 = vrcp.pop %v1486
      %v1770 = vrcp.pop %v1489
      %v1771 = vrcp.pop %v1492
      %v1772 = vrcp.pop %v1495
      %v1773 = vrcp.pop %v1498
      %v1774 = vrcp.pop %v1501
      %v1775 = vmul.f32 %v1617, %v1743
      %v1776 = vmul.f32 %v1620, %v1744
      %v1777 = vmul.f32 %v1625, %v1745
      %v1778 = vmul.f32 %v1628, %v1746
      %v1779 = vmul.f32 %v1633, %v1747
      %v1780 = vmul.f32 %v1636, %v1748
      %v1781 = vmul.f32 %v1641, %v1749
      %v1782 = vmul.f32 %v1644, %v1750
      %v1783 = vmul.f32 %v1649, %v1751
      %v1784 = vmul.f32 %v1652, %v1752
      %v1785 = vmul.f32 %v1657, %v1753
      %v1786 = vmul.f32 %v1660, %v1754
      %v1787 = vmul.f32 %v1665, %v1755
      %v1788 = vmul.f32 %v1668, %v1756
      %v1789 = vmul.f32 %v1673, %v1757
      %v1790 = vmul.f32 %v1676, %v1758
      %v1791 = vmul.f32 %v1681, %v1759
      %v1792 = vmul.f32 %v1684, %v1760
      %v1793 = vmul.f32 %v1689, %v1761
      %v1794 = vmul.f32 %v1692, %v1762
      %v1795 = vmul.f32 %v1697, %v1763
      %v1796 = vmul.f32 %v1700, %v1764
      %v1797 = vmul.f32 %v1705, %v1765
      %v1798 = vmul.f32 %v1708, %v1766
      %v1799 = vmul.f32 %v1713, %v1767
      %v1800 = vmul.f32 %v1716, %v1768
      %v1801 = vmul.f32 %v1721, %v1769
      %v1802 = vmul.f32 %v1724, %v1770
      %v1803 = vmul.f32 %v1729, %v1771
      %v1804 = vmul.f32 %v1732, %v1772
      %v1805 = vmul.f32 %v1737, %v1773
      %v1806 = vmul.f32 %v1740, %v1774
      %v1807 = vpack.c.bf16 %v1776, %v1775
      %v1808 = vpack.c.bf16 %v1778, %v1777
      %v1809 = vpack.c.bf16 %v1780, %v1779
      %v1810 = vpack.c.bf16 %v1782, %v1781
      %v1811 = vpack.c.bf16 %v1784, %v1783
      %v1812 = vpack.c.bf16 %v1786, %v1785
      %v1813 = vpack.c.bf16 %v1788, %v1787
      %v1814 = vpack.c.bf16 %v1790, %v1789
      %v1815 = vpack.c.bf16 %v1792, %v1791
      %v1816 = vpack.c.bf16 %v1794, %v1793
      %v1817 = vpack.c.bf16 %v1796, %v1795
      %v1818 = vpack.c.bf16 %v1798, %v1797
      %v1819 = vpack.c.bf16 %v1800, %v1799
      %v1820 = vpack.c.bf16 %v1802, %v1801
      %v1821 = vpack.c.bf16 %v1804, %v1803
      %v1822 = vpack.c.bf16 %v1806, %v1805
      %v1823 = vld [vmem:[%s3] sm:$0x3]
      %v1824 = vld [vmem:[%s237] sm:$0xff]
      %v1825 = vld [vmem:[%s237 + $0x8] sm:$0xff]
      %v1826 = vld [vmem:[%s237 + $0x10] sm:$0xff]
      %v1827 = vld [vmem:[%s237 + $0x18] sm:$0xff]
      %v1828 = vld [vmem:[%s237 + $0x20] sm:$0xff]
      %v1829 = vld [vmem:[%s237 + $0x28] sm:$0xff]
      %v1830 = vld [vmem:[%s237 + $0x30] sm:$0xff]
      %v1831 = vld [vmem:[%s237 + $0x38] sm:$0xff]
      %v1832 = vld [vmem:[%s237 + $0x40] sm:$0xff]
      %v1833 = vld [vmem:[%s237 + $0x48] sm:$0xff]
      %v1834 = vld [vmem:[%s237 + $0x50] sm:$0xff]
      %v1835 = vld [vmem:[%s237 + $0x58] sm:$0xff]
      %v1836 = vld [vmem:[%s237 + $0x60] sm:$0xff]
      %v1837 = vld [vmem:[%s237 + $0x68] sm:$0xff]
      %v1838 = vld [vmem:[%s237 + $0x70] sm:$0xff]
      %v1839 = vld [vmem:[%s237 + $0x78] sm:$0xff]
      %v1840 = vld [vmem:[%s237 + $0x80] sm:$0xff]
      %v1841 = vld [vmem:[%s237 + $0x88] sm:$0xff]
      %v1842 = vld [vmem:[%s237 + $0x90] sm:$0xff]
      %v1843 = vld [vmem:[%s237 + $0x98] sm:$0xff]
      %v1844 = vld [vmem:[%s237 + $0xa0] sm:$0xff]
      %v1845 = vld [vmem:[%s237 + $0xa8] sm:$0xff]
      %v1846 = vld [vmem:[%s237 + $0xb0] sm:$0xff]
      %v1847 = vld [vmem:[%s237 + $0xb8] sm:$0xff]
      %v1848 = vld [vmem:[%s237 + $0xc0] sm:$0xff]
      %v1849 = vld [vmem:[%s237 + $0xc8] sm:$0xff]
      %v1850 = vld [vmem:[%s237 + $0xd0] sm:$0xff]
      %v1851 = vld [vmem:[%s237 + $0xd8] sm:$0xff]
      %v1852 = vld [vmem:[%s237 + $0xe0] sm:$0xff]
      %v1853 = vld [vmem:[%s237 + $0xe8] sm:$0xff]
      %v1854 = vld [vmem:[%s237 + $0xf0] sm:$0xff]
      %v1855 = vld [vmem:[%s237 + $0xf8] sm:$0xff]
      %v1856 = vld [vmem:[%s4] sm:$0x1]
      %v1858 = vlaneseq
      %v1859 = vshrl.u32 %v1858, 7
      %v1860 = vsub.s32 0, %v1859
      %v1861 = vrot.slane %v1856, %v1860
      %v1864 = vsel %vm828, %v1807, 0
      %v1867 = vsel %vm828, %v1808, 0
      %v1870 = vsel %vm828, %v1809, 0
      %v1873 = vsel %vm828, %v1810, 0
      %v1876 = vsel %vm828, %v1811, 0
      %v1879 = vsel %vm828, %v1812, 0
      %v1882 = vsel %vm828, %v1813, 0
      %v1885 = vsel %vm828, %v1814, 0
      %v1888 = vsel %vm828, %v1815, 0
      %v1891 = vsel %vm828, %v1816, 0
      %v1894 = vsel %vm828, %v1817, 0
      %v1897 = vsel %vm828, %v1818, 0
      %v1900 = vsel %vm828, %v1819, 0
      %v1903 = vsel %vm828, %v1820, 0
      %v1906 = vsel %vm828, %v1821, 0
      %v1909 = vsel %vm828, %v1822, 0
      %vm1911 = vcmask 1041408
      %v1913 = vsel %vm1911, %v1823, 0
      %1915 = vmatprep.subr.bf16.mxu0 0
      %1916 = vmatpush1.bf16.msra.mxu0 0
      %1917 = vmatprep.subr.bf16.mxu0 0
      %1918 = vmatpush1.bf16.msra.mxu0 0
      %1919 = vmatprep.subr.bf16.mxu0 0
      %1920 = vmatpush1.bf16.msra.mxu0 0
      %1921 = vmatprep.subr.bf16.mxu0 0
      %1922 = vmatpush1.bf16.msra.mxu0 0
      %1923 = vmatprep.subr.bf16.mxu0 0
      %1924 = vmatpush1.bf16.msra.mxu0 0
      %1925 = vmatprep.subr.bf16.mxu0 0
      %1926 = vmatpush1.bf16.msra.mxu0 0
      %1927 = vmatprep.subr.bf16.mxu0 0
      %1928 = vmatpush1.bf16.msra.mxu0 0
      %1929 = vmatprep.subr.bf16.mxu0 0
      %1930 = vmatpush1.bf16.msra.mxu0 %v1913
      %1931 = vmatprep.subr.bf16.mxu0 0
      %1932 = vmatpush2.bf16.msra.mxu0 0
      %1933 = vmatprep.subr.bf16.mxu0 0
      %1934 = vmatpush2.bf16.msra.mxu0 0
      %1935 = vmatprep.subr.bf16.mxu0 0
      %1936 = vmatpush2.bf16.msra.mxu0 0
      %1937 = vmatprep.subr.bf16.mxu0 0
      %1938 = vmatpush2.bf16.msra.mxu0 0
      %1939 = vmatprep.subr.bf16.mxu0 0
      %1940 = vmatpush2.bf16.msra.mxu0 0
      %1941 = vmatprep.subr.bf16.mxu0 0
      %1942 = vmatpush2.bf16.msra.mxu0 0
      %1943 = vmatprep.subr.bf16.mxu0 0
      %1944 = vmatpush2.bf16.msra.mxu0 0
      %1945 = vmatprep.subr.bf16.mxu0 0
      %1946 = vmatpush2.bf16.msra.mxu0 0
      %1947 = vmatprep.mubr.bf16.mxu0 0
      %1948 = vmatmul.mubr.bf16.gmra.mxu0 %v1864
      %v1949 = vpop.f32.mrf.mxu0
      %v1950 = vadd.f32 %v1861, %v1949
      %v1951 = vpop.f32.mrf.mxu0
      %v1952 = vpop.f32.mrf.mxu0
      %v1953 = vadd.f32 %v1861, %v1952
      %v1954 = vpop.f32.mrf.mxu0
      %1955 = vmatprep.mubr.bf16.mxu0 0
      %1956 = vmatmul.mubr.bf16.gmra.mxu0 %v1867
      %v1957 = vpop.f32.mrf.mxu0
      %v1958 = vadd.f32 %v1861, %v1957
      %v1959 = vpop.f32.mrf.mxu0
      %v1960 = vpop.f32.mrf.mxu0
      %v1961 = vadd.f32 %v1861, %v1960
      %v1962 = vpop.f32.mrf.mxu0
      %1963 = vmatprep.mubr.bf16.mxu0 0
      %1964 = vmatmul.mubr.bf16.gmra.mxu0 %v1870
      %v1965 = vpop.f32.mrf.mxu0
      %v1966 = vadd.f32 %v1861, %v1965
      %v1967 = vpop.f32.mrf.mxu0
      %v1968 = vpop.f32.mrf.mxu0
      %v1969 = vadd.f32 %v1861, %v1968
      %v1970 = vpop.f32.mrf.mxu0
      %1971 = vmatprep.mubr.bf16.mxu0 0
      %1972 = vmatmul.mubr.bf16.gmra.mxu0 %v1873
      %v1973 = vpop.f32.mrf.mxu0
      %v1974 = vadd.f32 %v1861, %v1973
      %v1975 = vpop.f32.mrf.mxu0
      %v1976 = vpop.f32.mrf.mxu0
      %v1977 = vadd.f32 %v1861, %v1976
      %v1978 = vpop.f32.mrf.mxu0
      %1979 = vmatprep.mubr.bf16.mxu0 0
      %1980 = vmatmul.mubr.bf16.gmra.mxu0 %v1876
      %v1981 = vpop.f32.mrf.mxu0
      %v1982 = vadd.f32 %v1861, %v1981
      %v1983 = vpop.f32.mrf.mxu0
      %v1984 = vpop.f32.mrf.mxu0
      %v1985 = vadd.f32 %v1861, %v1984
      %v1986 = vpop.f32.mrf.mxu0
      %1987 = vmatprep.mubr.bf16.mxu0 0
      %1988 = vmatmul.mubr.bf16.gmra.mxu0 %v1879
      %v1989 = vpop.f32.mrf.mxu0
      %v1990 = vadd.f32 %v1861, %v1989
      %v1991 = vpop.f32.mrf.mxu0
      %v1992 = vpop.f32.mrf.mxu0
      %v1993 = vadd.f32 %v1861, %v1992
      %v1994 = vpop.f32.mrf.mxu0
      %1995 = vmatprep.mubr.bf16.mxu0 0
      %1996 = vmatmul.mubr.bf16.gmra.mxu0 %v1882
      %v1997 = vpop.f32.mrf.mxu0
      %v1998 = vadd.f32 %v1861, %v1997
      %v1999 = vpop.f32.mrf.mxu0
      %v2000 = vpop.f32.mrf.mxu0
      %v2001 = vadd.f32 %v1861, %v2000
      %v2002 = vpop.f32.mrf.mxu0
      %2003 = vmatprep.mubr.bf16.mxu0 0
      %2004 = vmatmul.mubr.bf16.gmra.mxu0 %v1885
      %v2005 = vpop.f32.mrf.mxu0
      %v2006 = vadd.f32 %v1861, %v2005
      %v2007 = vpop.f32.mrf.mxu0
      %v2008 = vpop.f32.mrf.mxu0
      %v2009 = vadd.f32 %v1861, %v2008
      %v2010 = vpop.f32.mrf.mxu0
      %2011 = vmatprep.mubr.bf16.mxu0 0
      %2012 = vmatmul.mubr.bf16.gmra.mxu0 %v1888
      %v2013 = vpop.f32.mrf.mxu0
      %v2014 = vadd.f32 %v1861, %v2013
      %v2015 = vpop.f32.mrf.mxu0
      %v2016 = vpop.f32.mrf.mxu0
      %v2017 = vadd.f32 %v1861, %v2016
      %v2018 = vpop.f32.mrf.mxu0
      %2019 = vmatprep.mubr.bf16.mxu0 0
      %2020 = vmatmul.mubr.bf16.gmra.mxu0 %v1891
      %v2021 = vpop.f32.mrf.mxu0
      %v2022 = vadd.f32 %v1861, %v2021
      %v2023 = vpop.f32.mrf.mxu0
      %v2024 = vpop.f32.mrf.mxu0
      %v2025 = vadd.f32 %v1861, %v2024
      %v2026 = vpop.f32.mrf.mxu0
      %2027 = vmatprep.mubr.bf16.mxu0 0
      %2028 = vmatmul.mubr.bf16.gmra.mxu0 %v1894
      %v2029 = vpop.f32.mrf.mxu0
      %v2030 = vadd.f32 %v1861, %v2029
      %v2031 = vpop.f32.mrf.mxu0
      %v2032 = vpop.f32.mrf.mxu0
      %v2033 = vadd.f32 %v1861, %v2032
      %v2034 = vpop.f32.mrf.mxu0
      %2035 = vmatprep.mubr.bf16.mxu0 0
      %2036 = vmatmul.mubr.bf16.gmra.mxu0 %v1897
      %v2037 = vpop.f32.mrf.mxu0
      %v2038 = vadd.f32 %v1861, %v2037
      %v2039 = vpop.f32.mrf.mxu0
      %v2040 = vpop.f32.mrf.mxu0
      %v2041 = vadd.f32 %v1861, %v2040
      %v2042 = vpop.f32.mrf.mxu0
      %2043 = vmatprep.mubr.bf16.mxu0 0
      %2044 = vmatmul.mubr.bf16.gmra.mxu0 %v1900
      %v2045 = vpop.f32.mrf.mxu0
      %v2046 = vadd.f32 %v1861, %v2045
      %v2047 = vpop.f32.mrf.mxu0
      %v2048 = vpop.f32.mrf.mxu0
      %v2049 = vadd.f32 %v1861, %v2048
      %v2050 = vpop.f32.mrf.mxu0
      %2051 = vmatprep.mubr.bf16.mxu0 0
      %2052 = vmatmul.mubr.bf16.gmra.mxu0 %v1903
      %v2053 = vpop.f32.mrf.mxu0
      %v2054 = vadd.f32 %v1861, %v2053
      %v2055 = vpop.f32.mrf.mxu0
      %v2056 = vpop.f32.mrf.mxu0
      %v2057 = vadd.f32 %v1861, %v2056
      %v2058 = vpop.f32.mrf.mxu0
      %2059 = vmatprep.mubr.bf16.mxu0 0
      %2060 = vmatmul.mubr.bf16.gmra.mxu0 %v1906
      %v2061 = vpop.f32.mrf.mxu0
      %v2062 = vadd.f32 %v1861, %v2061
      %v2063 = vpop.f32.mrf.mxu0
      %v2064 = vpop.f32.mrf.mxu0
      %v2065 = vadd.f32 %v1861, %v2064
      %v2066 = vpop.f32.mrf.mxu0
      %2067 = vmatprep.mubr.bf16.mxu0 0
      %2068 = vmatmul.mubr.bf16.gmra.mxu0 %v1909
      %v2069 = vpop.f32.mrf.mxu0
      %v2070 = vadd.f32 %v1861, %v2069
      %v2071 = vpop.f32.mrf.mxu0
      %v2072 = vpop.f32.mrf.mxu0
      %v2073 = vadd.f32 %v1861, %v2072
      %v2074 = vpop.f32.mrf.mxu0
      %2075 = vdwg.mxu0
      %v2076 = vadd.f32 %v1950, %v1824
      %v2077 = vadd.f32 %v1953, %v1825
      %v2078 = vadd.f32 %v1958, %v1826
      %v2079 = vadd.f32 %v1961, %v1827
      %v2080 = vadd.f32 %v1966, %v1828
      %v2081 = vadd.f32 %v1969, %v1829
      %v2082 = vadd.f32 %v1974, %v1830
      %v2083 = vadd.f32 %v1977, %v1831
      %v2084 = vadd.f32 %v1982, %v1832
      %v2085 = vadd.f32 %v1985, %v1833
      %v2086 = vadd.f32 %v1990, %v1834
      %v2087 = vadd.f32 %v1993, %v1835
      %v2088 = vadd.f32 %v1998, %v1836
      %v2089 = vadd.f32 %v2001, %v1837
      %v2090 = vadd.f32 %v2006, %v1838
      %v2091 = vadd.f32 %v2009, %v1839
      %v2092 = vadd.f32 %v2014, %v1840
      %v2093 = vadd.f32 %v2017, %v1841
      %v2094 = vadd.f32 %v2022, %v1842
      %v2095 = vadd.f32 %v2025, %v1843
      %v2096 = vadd.f32 %v2030, %v1844
      %v2097 = vadd.f32 %v2033, %v1845
      %v2098 = vadd.f32 %v2038, %v1846
      %v2099 = vadd.f32 %v2041, %v1847
      %v2100 = vadd.f32 %v2046, %v1848
      %v2101 = vadd.f32 %v2049, %v1849
      %v2102 = vadd.f32 %v2054, %v1850
      %v2103 = vadd.f32 %v2057, %v1851
      %v2104 = vadd.f32 %v2062, %v1852
      %v2105 = vadd.f32 %v2065, %v1853
      %v2106 = vadd.f32 %v2070, %v1854
      %v2107 = vadd.f32 %v2073, %v1855
      %2108 = vst.msk [vmem:[%s246] sm:$0xff] %vm828, %v2076
      %2109 = vst.msk [vmem:[%s246 + $0x8] sm:$0xff] %vm828, %v2077
      %2110 = vst.msk [vmem:[%s246 + $0x10] sm:$0xff] %vm828, %v2078
      %2111 = vst.msk [vmem:[%s246 + $0x18] sm:$0xff] %vm828, %v2079
      %2112 = vst.msk [vmem:[%s246 + $0x20] sm:$0xff] %vm828, %v2080
      %2113 = vst.msk [vmem:[%s246 + $0x28] sm:$0xff] %vm828, %v2081
      %2114 = vst.msk [vmem:[%s246 + $0x30] sm:$0xff] %vm828, %v2082
      %2115 = vst.msk [vmem:[%s246 + $0x38] sm:$0xff] %vm828, %v2083
      %2116 = vst.msk [vmem:[%s246 + $0x40] sm:$0xff] %vm828, %v2084
      %2117 = vst.msk [vmem:[%s246 + $0x48] sm:$0xff] %vm828, %v2085
      %2118 = vst.msk [vmem:[%s246 + $0x50] sm:$0xff] %vm828, %v2086
      %2119 = vst.msk [vmem:[%s246 + $0x58] sm:$0xff] %vm828, %v2087
      %2120 = vst.msk [vmem:[%s246 + $0x60] sm:$0xff] %vm828, %v2088
      %2121 = vst.msk [vmem:[%s246 + $0x68] sm:$0xff] %vm828, %v2089
      %2122 = vst.msk [vmem:[%s246 + $0x70] sm:$0xff] %vm828, %v2090
      %2123 = vst.msk [vmem:[%s246 + $0x78] sm:$0xff] %vm828, %v2091
      %2124 = vst.msk [vmem:[%s246 + $0x80] sm:$0xff] %vm828, %v2092
      %2125 = vst.msk [vmem:[%s246 + $0x88] sm:$0xff] %vm828, %v2093
      %2126 = vst.msk [vmem:[%s246 + $0x90] sm:$0xff] %vm828, %v2094
      %2127 = vst.msk [vmem:[%s246 + $0x98] sm:$0xff] %vm828, %v2095
      %2128 = vst.msk [vmem:[%s246 + $0xa0] sm:$0xff] %vm828, %v2096
      %2129 = vst.msk [vmem:[%s246 + $0xa8] sm:$0xff] %vm828, %v2097
      %2130 = vst.msk [vmem:[%s246 + $0xb0] sm:$0xff] %vm828, %v2098
      %2131 = vst.msk [vmem:[%s246 + $0xb8] sm:$0xff] %vm828, %v2099
      %2132 = vst.msk [vmem:[%s246 + $0xc0] sm:$0xff] %vm828, %v2100
      %2133 = vst.msk [vmem:[%s246 + $0xc8] sm:$0xff] %vm828, %v2101
      %2134 = vst.msk [vmem:[%s246 + $0xd0] sm:$0xff] %vm828, %v2102
      %2135 = vst.msk [vmem:[%s246 + $0xd8] sm:$0xff] %vm828, %v2103
      %2136 = vst.msk [vmem:[%s246 + $0xe0] sm:$0xff] %vm828, %v2104
      %2137 = vst.msk [vmem:[%s246 + $0xe8] sm:$0xff] %vm828, %v2105
      %2138 = vst.msk [vmem:[%s246 + $0xf0] sm:$0xff] %vm828, %v2106
      %2139 = vst.msk [vmem:[%s246 + $0xf8] sm:$0xff] %vm828, %v2107
      %s2140 = smul.u32 32, %s21
      %p2141 = scmp.lt.s32.totalorder %s20, 1
      %s2142 = scalar_select %p2141, %s20, 1
      %p2143 = scmp.lt.s32.totalorder %s2140, 31
      %s2144 = scalar_select %p2143, %s2140, 31
      %s2145 = smul.addr %s2142, 32
      %s2146 = sadd.s32 %s2144, %s2145
      %s2147 = smul.addr %s2146, 8
      %s2148 = scalar_lea.vmem %s5, %s2147
      // Predicated region
      $region45: #{tpu_custom_call.1} parent=39 // pred_check
        %p2149 = pneg %p158
      $region46: #{tpu_custom_call.1} parent=39 // pred_check_branch
        %2151 = sbr.rel (%p2149) target = $region48
      $region47: #{tpu_custom_call.1} parent=39 // pred_region
        %s2152 = smul.u32 32, %s21
      $region48: #{tpu_custom_call.1} parent=39 // pred_fallthru
        _
    $region40: #{tpu_custom_call.1} parent=5 // pred_fallthru
      _
    %p2153 = scmp.le.s32.totalorder 2, %s11
    // Predicated region
    $region49: #{tpu_custom_call.1} parent=5 // pred_check
      %p2154 = pneg %p2153
    $region50: #{tpu_custom_call.1} parent=5 // pred_check_branch
      %2156 = sbr.rel (%p2154) target = $region52
    $region51: #{tpu_custom_call.1} parent=5 // pred_region
      %s2157 = ssub.s32 %s11, 2
      // Predicated region
      $region53: #{tpu_custom_call.1} parent=51 // pred_check
        %p2158 = pneg %p164
      $region54: #{tpu_custom_call.1} parent=51 // pred_check_branch
        %2160 = sbr.rel (%p2158) target = $region56
      $region55: #{tpu_custom_call.1} parent=51 // pred_region
        %s2161 = smul.u32 32, %s23
        %p2162 = scmp.lt.s32.totalorder %s22, 1
        %s2163 = scalar_select %p2162, %s22, 1
        %p2164 = scmp.lt.s32.totalorder %s2161, 31
        %s2165 = scalar_select %p2164, %s2161, 31
        %s2166 = smul.addr %s2163, 32
        %s2167 = sadd.s32 %s2165, %s2166
        %s2168 = smul.addr %s2167, 8
        %s2169 = scalar_lea.vmem %s5, %s2168
      $region56: #{tpu_custom_call.1} parent=51 // pred_fallthru
        _
    $region52: #{tpu_custom_call.1} parent=5 // pred_fallthru
      _
  $region6: #{tpu_custom_call.1} parent=0 // loop_footer
    %s15 = sadd.s32 1, %s11
  $region7: #{tpu_custom_call.1} parent=0 // loop_footer_branch
    %10 = sbr.rel target = $region3
  $region8: #{tpu_custom_call.1} parent=0 // loop_exit
    _

</llo_original>
